<compile_context>
chip_gen: v5e
topology: v5e:2x2
jax: 0.10.0
libtpu: 0.0.40
codegen_flags: <defaults>
</compile_context>

<pallas_src>
import functools

import jax
import jax.numpy as jnp
from jax import lax
from jax.experimental import pallas as pl
from jax.experimental.pallas import tpu as pltpu

INPUT_SIZE = 6
HIDDEN_SIZE = 10
NUM_LAYERS = 1      # forward only uses a single-layer LSTM
OUTPUT_SIZE = 50

LANE = 128
SUBLANE = 8


def _round_up(n, m):
    return ((n + m - 1) // m) * m


def lstm_predictor_kernel(x_ref, len_ref, wih_ref, whh_ref, b_ref,
                          wfc_ref, bfc_ref, out_ref, gx_ref, *, T, Bp):
    """All operands resident in VMEM (everything is tiny).

    x_ref    : (T*Bp, Ip)      f32  time-major input, flattened, zero-padded (Ip = 8)
    len_ref  : (Bp, 128)       i32  lengths[b] broadcast along lanes (pad rows = 0)
    wih_ref  : (Ip, 4*128)     f32  W_ih^T, gate g in lanes [g*128, g*128+H), zeros elsewhere
    whh_ref  : (128, 4*128)    f32  W_hh^T, same gate layout, pad rows zero
    b_ref    : (1, 4*128)      f32  b_ih + b_hh, same gate layout
    wfc_ref  : (128, 128)      f32  W_fc^T zero-padded
    bfc_ref  : (1, 128)        f32  b_fc zero-padded
    out_ref  : (Bp, 128)       f32  padded output
    gx_ref   : (T*Bp, 4*128)   f32  VMEM scratch: precomputed input projection + bias
    """
    Hp = whh_ref.shape[0]                      # 128 (one lane block per gate)

    # ---- Hoisted input projection: one matmul for all T steps, bias folded in. ----
    gx_ref[...] = (jnp.dot(x_ref[...], wih_ref[...],
                           preferred_element_type=jnp.float32)
                   + b_ref[...])

    # lengths: one vreg, cheap to keep live across the loop.
    lens = len_ref[...]                        # (Bp, 128) int32

    def step(t, carry):
        h, c = carry
        row = pl.multiple_of(t * Bp, SUBLANE)
        # whh_ref indexed HERE (short live range) — do not hoist a 64-vreg weight value
        # across the unrolled loop.
        gates = gx_ref[pl.ds(row, Bp), :] + jnp.dot(
            h, whh_ref[...], preferred_element_type=jnp.float32)   # (Bp, 4*128)
        # Lane-aligned, whole-vreg gate slices (PyTorch gate order: i, f, g, o).
        i_g = jax.nn.sigmoid(gates[:, 0 * LANE:1 * LANE])
        f_g = jax.nn.sigmoid(gates[:, 1 * LANE:2 * LANE])
        g_g = jnp.tanh(gates[:, 2 * LANE:3 * LANE])
        o_g = jax.nn.sigmoid(gates[:, 3 * LANE:4 * LANE])
        c_new = f_g * c + i_g * g_g
        h_new = o_g * jnp.tanh(c_new)
        # packed-sequence semantics: advance state only while t < lengths[b].
        # Mask depends only on t (off the h->h chain); single vselect per state.
        valid = t < lens                                            # (Bp, 128) bool
        h = jnp.where(valid, h_new, h)
        c = jnp.where(valid, c_new, c)
        return h, c

    h0 = jnp.zeros((Bp, Hp), jnp.float32)
    c0 = jnp.zeros((Bp, Hp), jnp.float32)
    # T is static and small -> fully unroll the serial recurrence.
    # TODO(synk): for large T switch to partial unroll (unroll=4..8).
    h_final, _ = lax.fori_loop(0, T, step, (h0, c0), unroll=True)

    # pad_packed_sequence pads to max(lengths); out[:, -1, :] is h_final only for the
    # full-length sequences and ZERO for shorter / padded batch rows.
    max_len = jnp.max(lens)                                         # one-off reduce
    last_h = jnp.where(lens == max_len, h_final, 0.0)
    out_ref[...] = (jnp.dot(last_h, wfc_ref[...],
                            preferred_element_type=jnp.float32)
                    + bfc_ref[...])


def pad_lstm_params(params):
    """One-time (init-path) construction of gate-block-padded weights.

    Gate g of W_ih^T / W_hh^T / bias lives in lanes [g*128, g*128+H); padded rows and
    lanes are zero so pad lanes never contaminate the real H lanes.
    """
    H = params["w_hh"].shape[1]
    I = params["w_ih"].shape[1]
    O = params["w_fc"].shape[0]
    assert H <= LANE and O <= LANE and I <= LANE
    Ip = _round_up(I, SUBLANE)          # pad features to 8, not 128
    G = 4 * LANE

    def gate_pad_cols(w_t):             # (rows, 4H) -> (rows, 4*128), pad cols zero
        rows = w_t.shape[0]
        out = jnp.zeros((rows, G), jnp.float32)
        for g in range(4):
            out = out.at[:, g * LANE:g * LANE + H].set(w_t[:, g * H:(g + 1) * H])
        return out

    wih_p = jnp.zeros((Ip, G), jnp.float32).at[:I].set(
        gate_pad_cols(params["w_ih"].T.astype(jnp.float32)))              # (Ip, 4*128)
    whh_p = jnp.zeros((LANE, G), jnp.float32).at[:H].set(
        gate_pad_cols(params["w_hh"].T.astype(jnp.float32)))              # (128, 4*128)
    bias_p = gate_pad_cols(
        (params["b_ih"] + params["b_hh"]).reshape(1, 4 * H).astype(jnp.float32))
    wfc_p = jnp.zeros((LANE, LANE), jnp.float32).at[:H, :O].set(
        params["w_fc"].T.astype(jnp.float32))                             # (128, 128)
    bfc_p = jnp.zeros((1, LANE), jnp.float32).at[0, :O].set(
        params["b_fc"].astype(jnp.float32))

    return {"wih_p": wih_p, "whh_p": whh_p, "bias_p": bias_p,
            "wfc_p": wfc_p, "bfc_p": bfc_p,
            "input_size": I, "hidden_size": H, "output_size": O}


def lstm_predictor(x, lengths, padded):
    """x: (B, T, I) f32 batch_first (PyTorch convention); lengths: (B,) int32.

    `padded` is the output of pad_lstm_params (weights already padded once at init).
    """
    B, T, I = x.shape
    assert I == padded["input_size"]
    O = padded["output_size"]
    Ip = padded["wih_p"].shape[0]
    G = padded["wih_p"].shape[1]
    Bp = max(SUBLANE, _round_up(B, SUBLANE))

    # ---- time-major, zero-padded, pre-flattened input (only per-call data prep) ----
    x_tbi = jnp.transpose(x, (1, 0, 2)).astype(jnp.float32)               # (T, B, I)
    x_p = jnp.zeros((T, Bp, Ip), jnp.float32).at[:, :B, :I].set(x_tbi)
    x_flat = x_p.reshape(T * Bp, Ip)

    # ---- lengths: single small int32 operand; masks are built in-kernel ----
    len_p = jnp.zeros((Bp,), jnp.int32).at[:B].set(lengths.astype(jnp.int32))
    len_b = jnp.broadcast_to(len_p[:, None], (Bp, LANE)).astype(jnp.int32)

    vmem = pl.BlockSpec(memory_space=pltpu.MemorySpace.VMEM)
    kernel = functools.partial(lstm_predictor_kernel, T=T, Bp=Bp)
    # TODO(synk): for large B add a 'parallel' batch-tile grid axis (v7x 2nd TensorCore)
    # with constant index_maps for the weights; single invocation is right for tiny B.
    out_p = pl.pallas_call(
        kernel,
        out_shape=jax.ShapeDtypeStruct((Bp, LANE), jnp.float32),
        in_specs=[vmem] * 7,
        out_specs=vmem,
        scratch_shapes=[pltpu.VMEM((T * Bp, G), jnp.float32)],
    )(x_flat, len_b, padded["wih_p"], padded["whh_p"], padded["bias_p"],
      padded["wfc_p"], padded["bfc_p"])

    return out_p[:B, :O]


def init_params(key, input_size, hidden_size, output_size):
    """Deterministic init mimicking PyTorch's U(-1/sqrt(H), 1/sqrt(H))."""
    ks = jax.random.split(key, 6)
    k_lstm = 1.0 / jnp.sqrt(hidden_size)
    k_fc = 1.0 / jnp.sqrt(hidden_size)
    u = lambda k, shape, s: jax.random.uniform(k, shape, jnp.float32, -s, s)
    return {
        "w_ih": u(ks[0], (4 * hidden_size, input_size), k_lstm),
        "w_hh": u(ks[1], (4 * hidden_size, hidden_size), k_lstm),
        "b_ih": u(ks[2], (4 * hidden_size,), k_lstm),
        "b_hh": u(ks[3], (4 * hidden_size,), k_lstm),
        "w_fc": u(ks[4], (output_size, hidden_size), k_fc),
        "b_fc": u(ks[5], (output_size,), k_fc),
    }


def reference_forward(x, lengths, params):
    """Pure-JAX reference of the PyTorch forward (masked LSTM + fc on last step)."""
    B, T, _ = x.shape
    H = params["w_hh"].shape[1]
    b = params["b_ih"] + params["b_hh"]
    h = jnp.zeros((B, H), jnp.float32)
    c = jnp.zeros((B, H), jnp.float32)
    for t in range(T):
        g = x[:, t, :] @ params["w_ih"].T + h @ params["w_hh"].T + b
        i_g = jax.nn.sigmoid(g[:, 0:H])
        f_g = jax.nn.sigmoid(g[:, H:2 * H])
        g_g = jnp.tanh(g[:, 2 * H:3 * H])
        o_g = jax.nn.sigmoid(g[:, 3 * H:4 * H])
        c_new = f_g * c + i_g * g_g
        h_new = o_g * jnp.tanh(c_new)
        valid = (t < lengths)[:, None]
        h = jnp.where(valid, h_new, h)
        c = jnp.where(valid, c_new, c)
    last = jnp.where((lengths == jnp.max(lengths))[:, None], h, 0.0)
    return last @ params["w_fc"].T + params["b_fc"]


if __name__ == "__main__":
    key = jax.random.PRNGKey(0)
    k_param, k_x = jax.random.split(key)

    B, T = 2, 8
    params = init_params(k_param, INPUT_SIZE, HIDDEN_SIZE, OUTPUT_SIZE)
    padded = pad_lstm_params(params)            # built ONCE (init path), reused per call
    x = jax.random.normal(k_x, (B, T, INPUT_SIZE), jnp.float32)
    lengths = jnp.array([8, 5], dtype=jnp.int32)   # second sequence is padded

    out = lstm_predictor(x, lengths, padded)
    jax.block_until_ready(out)
    assert out.shape == (B, OUTPUT_SIZE)

    ref = reference_forward(x, lengths, params)
    # All-f32 kernel: tight tolerance so layout/padding bugs are actually caught.
    assert jnp.max(jnp.abs(out - ref)) < 1e-4, "kernel mismatch vs pure-JAX reference"
    print("KERNEL_OK")
</pallas_src>

<mosaic_0001>
module attributes {stable_mosaic.version = 11 : i64} {
  func.func @lstm_predictor_kernel(%arg0: memref<64x8xf32, #tpu.memory_space<vmem>>, %arg1: memref<8x128xi32, #tpu.memory_space<vmem>>, %arg2: memref<8x512xf32, #tpu.memory_space<vmem>>, %arg3: memref<128x512xf32, #tpu.memory_space<vmem>>, %arg4: memref<1x512xf32, #tpu.memory_space<vmem>>, %arg5: memref<128x128xf32, #tpu.memory_space<vmem>>, %arg6: memref<1x128xf32, #tpu.memory_space<vmem>>, %arg7: memref<8x128xf32, #tpu.memory_space<vmem>>, %arg8: memref<64x512xf32, #tpu.memory_space<vmem>>) attributes {dimension_semantics = [], scalar_prefetch = 0 : i64, scratch_operands = 1 : i64, tpu.core_type = #tpu.core_type<tc>} {
    %c0 = arith.constant 0 : index
    %c0_0 = arith.constant 0 : index
    %0 = vector.load %arg0[%c0, %c0_0] : memref<64x8xf32, #tpu.memory_space<vmem>>, vector<64x8xf32>
    %c0_1 = arith.constant 0 : index
    %c0_2 = arith.constant 0 : index
    %1 = vector.load %arg2[%c0_1, %c0_2] : memref<8x512xf32, #tpu.memory_space<vmem>>, vector<8x512xf32>
    %cst = arith.constant dense<0.000000e+00> : vector<64x512xf32>
    %2 = tpu.matmul %0, %1, %cst {dimension_numbers = #tpu.dot_dimension_numbers<[1], [0], [0], [1], [0, 0, 1, 1], [], []>} : vector<64x8xf32>, vector<8x512xf32>, vector<64x512xf32> -> vector<64x512xf32>
    %c0_3 = arith.constant 0 : index
    %c0_4 = arith.constant 0 : index
    %3 = vector.load %arg4[%c0_3, %c0_4] : memref<1x512xf32, #tpu.memory_space<vmem>>, vector<1x512xf32>
    %4 = vector.broadcast %3 : vector<1x512xf32> to vector<64x512xf32>
    %5 = arith.addf %2, %4 : vector<64x512xf32>
    %c0_5 = arith.constant 0 : index
    %c0_6 = arith.constant 0 : index
    %6 = vector.load %arg8[%c0_5, %c0_6] : memref<64x512xf32, #tpu.memory_space<vmem>>, vector<64x512xf32>
    tpu.vector_store %arg8[%c0_5, %c0_6], %5 {strides = array<i32>} : memref<64x512xf32, #tpu.memory_space<vmem>>, vector<64x512xf32>,
    %c0_7 = arith.constant 0 : index
    %c0_8 = arith.constant 0 : index
    %7 = vector.load %arg1[%c0_7, %c0_8] : memref<8x128xi32, #tpu.memory_space<vmem>>, vector<8x128xi32>
    %cst_9 = arith.constant 0.000000e+00 : f32
    %8 = vector.broadcast %cst_9 : f32 to vector<8x128xf32>
    %cst_10 = arith.constant 0.000000e+00 : f32
    %9 = vector.broadcast %cst_10 : f32 to vector<8x128xf32>
    %c0_i32 = arith.constant 0 : i32
    %c8_i32 = arith.constant 8 : i32
    %10 = arith.muli %c0_i32, %c8_i32 : i32
    %11 = tpu.assume_multiple %10, 8 : i32
    %12 = arith.index_cast %11 : i32 to index
    %c0_11 = arith.constant 0 : index
    %13 = vector.load %arg8[%12, %c0_11] : memref<64x512xf32, #tpu.memory_space<vmem>>, vector<8x512xf32>
    %c0_12 = arith.constant 0 : index
    %c0_13 = arith.constant 0 : index
    %14 = vector.load %arg3[%c0_12, %c0_13] : memref<128x512xf32, #tpu.memory_space<vmem>>, vector<128x512xf32>
    %cst_14 = arith.constant dense<0.000000e+00> : vector<8x512xf32>
    %15 = tpu.matmul %8, %14, %cst_14 {dimension_numbers = #tpu.dot_dimension_numbers<[1], [0], [0], [1], [0, 0, 1, 1], [], []>} : vector<8x128xf32>, vector<128x512xf32>, vector<8x512xf32> -> vector<8x512xf32>
    %16 = arith.addf %13, %15 : vector<8x512xf32>
    %17 = vector.extract_strided_slice %16 {offsets = [0, 0], sizes = [8, 128], strides = [1, 1]} : vector<8x512xf32> to vector<8x128xf32>
    %18 = arith.negf %17 : vector<8x128xf32>
    %19 = math.exp %18 : vector<8x128xf32>
    %cst_15 = arith.constant 1.000000e+00 : f32
    %20 = vector.broadcast %cst_15 : f32 to vector<8x128xf32>
    %21 = arith.addf %20, %19 : vector<8x128xf32>
    %22 = arith.divf %20, %21 : vector<8x128xf32>
    %23 = vector.extract_strided_slice %16 {offsets = [0, 128], sizes = [8, 128], strides = [1, 1]} : vector<8x512xf32> to vector<8x128xf32>
    %24 = arith.negf %23 : vector<8x128xf32>
    %25 = math.exp %24 : vector<8x128xf32>
    %cst_16 = arith.constant 1.000000e+00 : f32
    %26 = vector.broadcast %cst_16 : f32 to vector<8x128xf32>
    %27 = arith.addf %26, %25 : vector<8x128xf32>
    %28 = arith.divf %26, %27 : vector<8x128xf32>
    %29 = vector.extract_strided_slice %16 {offsets = [0, 256], sizes = [8, 128], strides = [1, 1]} : vector<8x512xf32> to vector<8x128xf32>
    %30 = math.tanh %29 : vector<8x128xf32>
    %31 = vector.extract_strided_slice %16 {offsets = [0, 384], sizes = [8, 128], strides = [1, 1]} : vector<8x512xf32> to vector<8x128xf32>
    %32 = arith.negf %31 : vector<8x128xf32>
    %33 = math.exp %32 : vector<8x128xf32>
    %cst_17 = arith.constant 1.000000e+00 : f32
    %34 = vector.broadcast %cst_17 : f32 to vector<8x128xf32>
    %35 = arith.addf %34, %33 : vector<8x128xf32>
    %36 = arith.divf %34, %35 : vector<8x128xf32>
    %37 = arith.mulf %28, %9 : vector<8x128xf32>
    %38 = arith.mulf %22, %30 : vector<8x128xf32>
    %39 = arith.addf %37, %38 : vector<8x128xf32>
    %40 = math.tanh %39 : vector<8x128xf32>
    %41 = arith.mulf %36, %40 : vector<8x128xf32>
    %42 = vector.broadcast %c0_i32 : i32 to vector<8x128xi32>
    %43 = arith.cmpi slt, %42, %7 : vector<8x128xi32>
    %44 = arith.select %43, %41, %8 : vector<8x128xi1>, vector<8x128xf32>
    %45 = arith.select %43, %39, %9 : vector<8x128xi1>, vector<8x128xf32>
    %c1_i32 = arith.constant 1 : i32
    %c8_i32_18 = arith.constant 8 : i32
    %46 = arith.muli %c1_i32, %c8_i32_18 : i32
    %47 = tpu.assume_multiple %46, 8 : i32
    %48 = arith.index_cast %47 : i32 to index
    %c0_19 = arith.constant 0 : index
    %49 = vector.load %arg8[%48, %c0_19] : memref<64x512xf32, #tpu.memory_space<vmem>>, vector<8x512xf32>
    %c0_20 = arith.constant 0 : index
    %c0_21 = arith.constant 0 : index
    %50 = vector.load %arg3[%c0_20, %c0_21] : memref<128x512xf32, #tpu.memory_space<vmem>>, vector<128x512xf32>
    %cst_22 = arith.constant dense<0.000000e+00> : vector<8x512xf32>
    %51 = tpu.matmul %44, %50, %cst_22 {dimension_numbers = #tpu.dot_dimension_numbers<[1], [0], [0], [1], [0, 0, 1, 1], [], []>} : vector<8x128xf32>, vector<128x512xf32>, vector<8x512xf32> -> vector<8x512xf32>
    %52 = arith.addf %49, %51 : vector<8x512xf32>
    %53 = vector.extract_strided_slice %52 {offsets = [0, 0], sizes = [8, 128], strides = [1, 1]} : vector<8x512xf32> to vector<8x128xf32>
    %54 = arith.negf %53 : vector<8x128xf32>
    %55 = math.exp %54 : vector<8x128xf32>
    %cst_23 = arith.constant 1.000000e+00 : f32
    %56 = vector.broadcast %cst_23 : f32 to vector<8x128xf32>
    %57 = arith.addf %56, %55 : vector<8x128xf32>
    %58 = arith.divf %56, %57 : vector<8x128xf32>
    %59 = vector.extract_strided_slice %52 {offsets = [0, 128], sizes = [8, 128], strides = [1, 1]} : vector<8x512xf32> to vector<8x128xf32>
    %60 = arith.negf %59 : vector<8x128xf32>
    %61 = math.exp %60 : vector<8x128xf32>
    %cst_24 = arith.constant 1.000000e+00 : f32
    %62 = vector.broadcast %cst_24 : f32 to vector<8x128xf32>
    %63 = arith.addf %62, %61 : vector<8x128xf32>
    %64 = arith.divf %62, %63 : vector<8x128xf32>
    %65 = vector.extract_strided_slice %52 {offsets = [0, 256], sizes = [8, 128], strides = [1, 1]} : vector<8x512xf32> to vector<8x128xf32>
    %66 = math.tanh %65 : vector<8x128xf32>
    %67 = vector.extract_strided_slice %52 {offsets = [0, 384], sizes = [8, 128], strides = [1, 1]} : vector<8x512xf32> to vector<8x128xf32>
    %68 = arith.negf %67 : vector<8x128xf32>
    %69 = math.exp %68 : vector<8x128xf32>
    %cst_25 = arith.constant 1.000000e+00 : f32
    %70 = vector.broadcast %cst_25 : f32 to vector<8x128xf32>
    %71 = arith.addf %70, %69 : vector<8x128xf32>
    %72 = arith.divf %70, %71 : vector<8x128xf32>
    %73 = arith.mulf %64, %45 : vector<8x128xf32>
    %74 = arith.mulf %58, %66 : vector<8x128xf32>
    %75 = arith.addf %73, %74 : vector<8x128xf32>
    %76 = math.tanh %75 : vector<8x128xf32>
    %77 = arith.mulf %72, %76 : vector<8x128xf32>
    %78 = vector.broadcast %c1_i32 : i32 to vector<8x128xi32>
    %79 = arith.cmpi slt, %78, %7 : vector<8x128xi32>
    %80 = arith.select %79, %77, %44 : vector<8x128xi1>, vector<8x128xf32>
    %81 = arith.select %79, %75, %45 : vector<8x128xi1>, vector<8x128xf32>
    %c2_i32 = arith.constant 2 : i32
    %c8_i32_26 = arith.constant 8 : i32
    %82 = arith.muli %c2_i32, %c8_i32_26 : i32
    %83 = tpu.assume_multiple %82, 8 : i32
    %84 = arith.index_cast %83 : i32 to index
    %c0_27 = arith.constant 0 : index
    %85 = vector.load %arg8[%84, %c0_27] : memref<64x512xf32, #tpu.memory_space<vmem>>, vector<8x512xf32>
    %c0_28 = arith.constant 0 : index
    %c0_29 = arith.constant 0 : index
    %86 = vector.load %arg3[%c0_28, %c0_29] : memref<128x512xf32, #tpu.memory_space<vmem>>, vector<128x512xf32>
    %cst_30 = arith.constant dense<0.000000e+00> : vector<8x512xf32>
    %87 = tpu.matmul %80, %86, %cst_30 {dimension_numbers = #tpu.dot_dimension_numbers<[1], [0], [0], [1], [0, 0, 1, 1], [], []>} : vector<8x128xf32>, vector<128x512xf32>, vector<8x512xf32> -> vector<8x512xf32>
    %88 = arith.addf %85, %87 : vector<8x512xf32>
    %89 = vector.extract_strided_slice %88 {offsets = [0, 0], sizes = [8, 128], strides = [1, 1]} : vector<8x512xf32> to vector<8x128xf32>
    %90 = arith.negf %89 : vector<8x128xf32>
    %91 = math.exp %90 : vector<8x128xf32>
    %cst_31 = arith.constant 1.000000e+00 : f32
    %92 = vector.broadcast %cst_31 : f32 to vector<8x128xf32>
    %93 = arith.addf %92, %91 : vector<8x128xf32>
    %94 = arith.divf %92, %93 : vector<8x128xf32>
    %95 = vector.extract_strided_slice %88 {offsets = [0, 128], sizes = [8, 128], strides = [1, 1]} : vector<8x512xf32> to vector<8x128xf32>
    %96 = arith.negf %95 : vector<8x128xf32>
    %97 = math.exp %96 : vector<8x128xf32>
    %cst_32 = arith.constant 1.000000e+00 : f32
    %98 = vector.broadcast %cst_32 : f32 to vector<8x128xf32>
    %99 = arith.addf %98, %97 : vector<8x128xf32>
    %100 = arith.divf %98, %99 : vector<8x128xf32>
    %101 = vector.extract_strided_slice %88 {offsets = [0, 256], sizes = [8, 128], strides = [1, 1]} : vector<8x512xf32> to vector<8x128xf32>
    %102 = math.tanh %101 : vector<8x128xf32>
    %103 = vector.extract_strided_slice %88 {offsets = [0, 384], sizes = [8, 128], strides = [1, 1]} : vector<8x512xf32> to vector<8x128xf32>
    %104 = arith.negf %103 : vector<8x128xf32>
    %105 = math.exp %104 : vector<8x128xf32>
    %cst_33 = arith.constant 1.000000e+00 : f32
    %106 = vector.broadcast %cst_33 : f32 to vector<8x128xf32>
    %107 = arith.addf %106, %105 : vector<8x128xf32>
    %108 = arith.divf %106, %107 : vector<8x128xf32>
    %109 = arith.mulf %100, %81 : vector<8x128xf32>
    %110 = arith.mulf %94, %102 : vector<8x128xf32>
    %111 = arith.addf %109, %110 : vector<8x128xf32>
    %112 = math.tanh %111 : vector<8x128xf32>
    %113 = arith.mulf %108, %112 : vector<8x128xf32>
    %114 = vector.broadcast %c2_i32 : i32 to vector<8x128xi32>
    %115 = arith.cmpi slt, %114, %7 : vector<8x128xi32>
    %116 = arith.select %115, %113, %80 : vector<8x128xi1>, vector<8x128xf32>
    %117 = arith.select %115, %111, %81 : vector<8x128xi1>, vector<8x128xf32>
    %c3_i32 = arith.constant 3 : i32
    %c8_i32_34 = arith.constant 8 : i32
    %118 = arith.muli %c3_i32, %c8_i32_34 : i32
    %119 = tpu.assume_multiple %118, 8 : i32
    %120 = arith.index_cast %119 : i32 to index
    %c0_35 = arith.constant 0 : index
    %121 = vector.load %arg8[%120, %c0_35] : memref<64x512xf32, #tpu.memory_space<vmem>>, vector<8x512xf32>
    %c0_36 = arith.constant 0 : index
    %c0_37 = arith.constant 0 : index
    %122 = vector.load %arg3[%c0_36, %c0_37] : memref<128x512xf32, #tpu.memory_space<vmem>>, vector<128x512xf32>
    %cst_38 = arith.constant dense<0.000000e+00> : vector<8x512xf32>
    %123 = tpu.matmul %116, %122, %cst_38 {dimension_numbers = #tpu.dot_dimension_numbers<[1], [0], [0], [1], [0, 0, 1, 1], [], []>} : vector<8x128xf32>, vector<128x512xf32>, vector<8x512xf32> -> vector<8x512xf32>
    %124 = arith.addf %121, %123 : vector<8x512xf32>
    %125 = vector.extract_strided_slice %124 {offsets = [0, 0], sizes = [8, 128], strides = [1, 1]} : vector<8x512xf32> to vector<8x128xf32>
    %126 = arith.negf %125 : vector<8x128xf32>
    %127 = math.exp %126 : vector<8x128xf32>
    %cst_39 = arith.constant 1.000000e+00 : f32
    %128 = vector.broadcast %cst_39 : f32 to vector<8x128xf32>
    %129 = arith.addf %128, %127 : vector<8x128xf32>
    %130 = arith.divf %128, %129 : vector<8x128xf32>
    %131 = vector.extract_strided_slice %124 {offsets = [0, 128], sizes = [8, 128], strides = [1, 1]} : vector<8x512xf32> to vector<8x128xf32>
    %132 = arith.negf %131 : vector<8x128xf32>
    %133 = math.exp %132 : vector<8x128xf32>
    %cst_40 = arith.constant 1.000000e+00 : f32
    %134 = vector.broadcast %cst_40 : f32 to vector<8x128xf32>
    %135 = arith.addf %134, %133 : vector<8x128xf32>
    %136 = arith.divf %134, %135 : vector<8x128xf32>
    %137 = vector.extract_strided_slice %124 {offsets = [0, 256], sizes = [8, 128], strides = [1, 1]} : vector<8x512xf32> to vector<8x128xf32>
    %138 = math.tanh %137 : vector<8x128xf32>
    %139 = vector.extract_strided_slice %124 {offsets = [0, 384], sizes = [8, 128], strides = [1, 1]} : vector<8x512xf32> to vector<8x128xf32>
    %140 = arith.negf %139 : vector<8x128xf32>
    %141 = math.exp %140 : vector<8x128xf32>
    %cst_41 = arith.constant 1.000000e+00 : f32
    %142 = vector.broadcast %cst_41 : f32 to vector<8x128xf32>
    %143 = arith.addf %142, %141 : vector<8x128xf32>
    %144 = arith.divf %142, %143 : vector<8x128xf32>
    %145 = arith.mulf %136, %117 : vector<8x128xf32>
    %146 = arith.mulf %130, %138 : vector<8x128xf32>
    %147 = arith.addf %145, %146 : vector<8x128xf32>
    %148 = math.tanh %147 : vector<8x128xf32>
    %149 = arith.mulf %144, %148 : vector<8x128xf32>
    %150 = vector.broadcast %c3_i32 : i32 to vector<8x128xi32>
    %151 = arith.cmpi slt, %150, %7 : vector<8x128xi32>
    %152 = arith.select %151, %149, %116 : vector<8x128xi1>, vector<8x128xf32>
    %153 = arith.select %151, %147, %117 : vector<8x128xi1>, vector<8x128xf32>
    %c4_i32 = arith.constant 4 : i32
    %c8_i32_42 = arith.constant 8 : i32
    %154 = arith.muli %c4_i32, %c8_i32_42 : i32
    %155 = tpu.assume_multiple %154, 8 : i32
    %156 = arith.index_cast %155 : i32 to index
    %c0_43 = arith.constant 0 : index
    %157 = vector.load %arg8[%156, %c0_43] : memref<64x512xf32, #tpu.memory_space<vmem>>, vector<8x512xf32>
    %c0_44 = arith.constant 0 : index
    %c0_45 = arith.constant 0 : index
    %158 = vector.load %arg3[%c0_44, %c0_45] : memref<128x512xf32, #tpu.memory_space<vmem>>, vector<128x512xf32>
    %cst_46 = arith.constant dense<0.000000e+00> : vector<8x512xf32>
    %159 = tpu.matmul %152, %158, %cst_46 {dimension_numbers = #tpu.dot_dimension_numbers<[1], [0], [0], [1], [0, 0, 1, 1], [], []>} : vector<8x128xf32>, vector<128x512xf32>, vector<8x512xf32> -> vector<8x512xf32>
    %160 = arith.addf %157, %159 : vector<8x512xf32>
    %161 = vector.extract_strided_slice %160 {offsets = [0, 0], sizes = [8, 128], strides = [1, 1]} : vector<8x512xf32> to vector<8x128xf32>
    %162 = arith.negf %161 : vector<8x128xf32>
    %163 = math.exp %162 : vector<8x128xf32>
    %cst_47 = arith.constant 1.000000e+00 : f32
    %164 = vector.broadcast %cst_47 : f32 to vector<8x128xf32>
    %165 = arith.addf %164, %163 : vector<8x128xf32>
    %166 = arith.divf %164, %165 : vector<8x128xf32>
    %167 = vector.extract_strided_slice %160 {offsets = [0, 128], sizes = [8, 128], strides = [1, 1]} : vector<8x512xf32> to vector<8x128xf32>
    %168 = arith.negf %167 : vector<8x128xf32>
    %169 = math.exp %168 : vector<8x128xf32>
    %cst_48 = arith.constant 1.000000e+00 : f32
    %170 = vector.broadcast %cst_48 : f32 to vector<8x128xf32>
    %171 = arith.addf %170, %169 : vector<8x128xf32>
    %172 = arith.divf %170, %171 : vector<8x128xf32>
    %173 = vector.extract_strided_slice %160 {offsets = [0, 256], sizes = [8, 128], strides = [1, 1]} : vector<8x512xf32> to vector<8x128xf32>
    %174 = math.tanh %173 : vector<8x128xf32>
    %175 = vector.extract_strided_slice %160 {offsets = [0, 384], sizes = [8, 128], strides = [1, 1]} : vector<8x512xf32> to vector<8x128xf32>
    %176 = arith.negf %175 : vector<8x128xf32>
    %177 = math.exp %176 : vector<8x128xf32>
    %cst_49 = arith.constant 1.000000e+00 : f32
    %178 = vector.broadcast %cst_49 : f32 to vector<8x128xf32>
    %179 = arith.addf %178, %177 : vector<8x128xf32>
    %180 = arith.divf %178, %179 : vector<8x128xf32>
    %181 = arith.mulf %172, %153 : vector<8x128xf32>
    %182 = arith.mulf %166, %174 : vector<8x128xf32>
    %183 = arith.addf %181, %182 : vector<8x128xf32>
    %184 = math.tanh %183 : vector<8x128xf32>
    %185 = arith.mulf %180, %184 : vector<8x128xf32>
    %186 = vector.broadcast %c4_i32 : i32 to vector<8x128xi32>
    %187 = arith.cmpi slt, %186, %7 : vector<8x128xi32>
    %188 = arith.select %187, %185, %152 : vector<8x128xi1>, vector<8x128xf32>
    %189 = arith.select %187, %183, %153 : vector<8x128xi1>, vector<8x128xf32>
    %c5_i32 = arith.constant 5 : i32
    %c8_i32_50 = arith.constant 8 : i32
    %190 = arith.muli %c5_i32, %c8_i32_50 : i32
    %191 = tpu.assume_multiple %190, 8 : i32
    %192 = arith.index_cast %191 : i32 to index
    %c0_51 = arith.constant 0 : index
    %193 = vector.load %arg8[%192, %c0_51] : memref<64x512xf32, #tpu.memory_space<vmem>>, vector<8x512xf32>
    %c0_52 = arith.constant 0 : index
    %c0_53 = arith.constant 0 : index
    %194 = vector.load %arg3[%c0_52, %c0_53] : memref<128x512xf32, #tpu.memory_space<vmem>>, vector<128x512xf32>
    %cst_54 = arith.constant dense<0.000000e+00> : vector<8x512xf32>
    %195 = tpu.matmul %188, %194, %cst_54 {dimension_numbers = #tpu.dot_dimension_numbers<[1], [0], [0], [1], [0, 0, 1, 1], [], []>} : vector<8x128xf32>, vector<128x512xf32>, vector<8x512xf32> -> vector<8x512xf32>
    %196 = arith.addf %193, %195 : vector<8x512xf32>
    %197 = vector.extract_strided_slice %196 {offsets = [0, 0], sizes = [8, 128], strides = [1, 1]} : vector<8x512xf32> to vector<8x128xf32>
    %198 = arith.negf %197 : vector<8x128xf32>
    %199 = math.exp %198 : vector<8x128xf32>
    %cst_55 = arith.constant 1.000000e+00 : f32
    %200 = vector.broadcast %cst_55 : f32 to vector<8x128xf32>
    %201 = arith.addf %200, %199 : vector<8x128xf32>
    %202 = arith.divf %200, %201 : vector<8x128xf32>
    %203 = vector.extract_strided_slice %196 {offsets = [0, 128], sizes = [8, 128], strides = [1, 1]} : vector<8x512xf32> to vector<8x128xf32>
    %204 = arith.negf %203 : vector<8x128xf32>
    %205 = math.exp %204 : vector<8x128xf32>
    %cst_56 = arith.constant 1.000000e+00 : f32
    %206 = vector.broadcast %cst_56 : f32 to vector<8x128xf32>
    %207 = arith.addf %206, %205 : vector<8x128xf32>
    %208 = arith.divf %206, %207 : vector<8x128xf32>
    %209 = vector.extract_strided_slice %196 {offsets = [0, 256], sizes = [8, 128], strides = [1, 1]} : vector<8x512xf32> to vector<8x128xf32>
    %210 = math.tanh %209 : vector<8x128xf32>
    %211 = vector.extract_strided_slice %196 {offsets = [0, 384], sizes = [8, 128], strides = [1, 1]} : vector<8x512xf32> to vector<8x128xf32>
    %212 = arith.negf %211 : vector<8x128xf32>
    %213 = math.exp %212 : vector<8x128xf32>
    %cst_57 = arith.constant 1.000000e+00 : f32
    %214 = vector.broadcast %cst_57 : f32 to vector<8x128xf32>
    %215 = arith.addf %214, %213 : vector<8x128xf32>
    %216 = arith.divf %214, %215 : vector<8x128xf32>
    %217 = arith.mulf %208, %189 : vector<8x128xf32>
    %218 = arith.mulf %202, %210 : vector<8x128xf32>
    %219 = arith.addf %217, %218 : vector<8x128xf32>
    %220 = math.tanh %219 : vector<8x128xf32>
    %221 = arith.mulf %216, %220 : vector<8x128xf32>
    %222 = vector.broadcast %c5_i32 : i32 to vector<8x128xi32>
    %223 = arith.cmpi slt, %222, %7 : vector<8x128xi32>
    %224 = arith.select %223, %221, %188 : vector<8x128xi1>, vector<8x128xf32>
    %225 = arith.select %223, %219, %189 : vector<8x128xi1>, vector<8x128xf32>
    %c6_i32 = arith.constant 6 : i32
    %c8_i32_58 = arith.constant 8 : i32
    %226 = arith.muli %c6_i32, %c8_i32_58 : i32
    %227 = tpu.assume_multiple %226, 8 : i32
    %228 = arith.index_cast %227 : i32 to index
    %c0_59 = arith.constant 0 : index
    %229 = vector.load %arg8[%228, %c0_59] : memref<64x512xf32, #tpu.memory_space<vmem>>, vector<8x512xf32>
    %c0_60 = arith.constant 0 : index
    %c0_61 = arith.constant 0 : index
    %230 = vector.load %arg3[%c0_60, %c0_61] : memref<128x512xf32, #tpu.memory_space<vmem>>, vector<128x512xf32>
    %cst_62 = arith.constant dense<0.000000e+00> : vector<8x512xf32>
    %231 = tpu.matmul %224, %230, %cst_62 {dimension_numbers = #tpu.dot_dimension_numbers<[1], [0], [0], [1], [0, 0, 1, 1], [], []>} : vector<8x128xf32>, vector<128x512xf32>, vector<8x512xf32> -> vector<8x512xf32>
    %232 = arith.addf %229, %231 : vector<8x512xf32>
    %233 = vector.extract_strided_slice %232 {offsets = [0, 0], sizes = [8, 128], strides = [1, 1]} : vector<8x512xf32> to vector<8x128xf32>
    %234 = arith.negf %233 : vector<8x128xf32>
    %235 = math.exp %234 : vector<8x128xf32>
    %cst_63 = arith.constant 1.000000e+00 : f32
    %236 = vector.broadcast %cst_63 : f32 to vector<8x128xf32>
    %237 = arith.addf %236, %235 : vector<8x128xf32>
    %238 = arith.divf %236, %237 : vector<8x128xf32>
    %239 = vector.extract_strided_slice %232 {offsets = [0, 128], sizes = [8, 128], strides = [1, 1]} : vector<8x512xf32> to vector<8x128xf32>
    %240 = arith.negf %239 : vector<8x128xf32>
    %241 = math.exp %240 : vector<8x128xf32>
    %cst_64 = arith.constant 1.000000e+00 : f32
    %242 = vector.broadcast %cst_64 : f32 to vector<8x128xf32>
    %243 = arith.addf %242, %241 : vector<8x128xf32>
    %244 = arith.divf %242, %243 : vector<8x128xf32>
    %245 = vector.extract_strided_slice %232 {offsets = [0, 256], sizes = [8, 128], strides = [1, 1]} : vector<8x512xf32> to vector<8x128xf32>
    %246 = math.tanh %245 : vector<8x128xf32>
    %247 = vector.extract_strided_slice %232 {offsets = [0, 384], sizes = [8, 128], strides = [1, 1]} : vector<8x512xf32> to vector<8x128xf32>
    %248 = arith.negf %247 : vector<8x128xf32>
    %249 = math.exp %248 : vector<8x128xf32>
    %cst_65 = arith.constant 1.000000e+00 : f32
    %250 = vector.broadcast %cst_65 : f32 to vector<8x128xf32>
    %251 = arith.addf %250, %249 : vector<8x128xf32>
    %252 = arith.divf %250, %251 : vector<8x128xf32>
    %253 = arith.mulf %244, %225 : vector<8x128xf32>
    %254 = arith.mulf %238, %246 : vector<8x128xf32>
    %255 = arith.addf %253, %254 : vector<8x128xf32>
    %256 = math.tanh %255 : vector<8x128xf32>
    %257 = arith.mulf %252, %256 : vector<8x128xf32>
    %258 = vector.broadcast %c6_i32 : i32 to vector<8x128xi32>
    %259 = arith.cmpi slt, %258, %7 : vector<8x128xi32>
    %260 = arith.select %259, %257, %224 : vector<8x128xi1>, vector<8x128xf32>
    %261 = arith.select %259, %255, %225 : vector<8x128xi1>, vector<8x128xf32>
    %c7_i32 = arith.constant 7 : i32
    %c8_i32_66 = arith.constant 8 : i32
    %262 = arith.muli %c7_i32, %c8_i32_66 : i32
    %263 = tpu.assume_multiple %262, 8 : i32
    %264 = arith.index_cast %263 : i32 to index
    %c0_67 = arith.constant 0 : index
    %265 = vector.load %arg8[%264, %c0_67] : memref<64x512xf32, #tpu.memory_space<vmem>>, vector<8x512xf32>
    %c0_68 = arith.constant 0 : index
    %c0_69 = arith.constant 0 : index
    %266 = vector.load %arg3[%c0_68, %c0_69] : memref<128x512xf32, #tpu.memory_space<vmem>>, vector<128x512xf32>
    %cst_70 = arith.constant dense<0.000000e+00> : vector<8x512xf32>
    %267 = tpu.matmul %260, %266, %cst_70 {dimension_numbers = #tpu.dot_dimension_numbers<[1], [0], [0], [1], [0, 0, 1, 1], [], []>} : vector<8x128xf32>, vector<128x512xf32>, vector<8x512xf32> -> vector<8x512xf32>
    %268 = arith.addf %265, %267 : vector<8x512xf32>
    %269 = vector.extract_strided_slice %268 {offsets = [0, 0], sizes = [8, 128], strides = [1, 1]} : vector<8x512xf32> to vector<8x128xf32>
    %270 = arith.negf %269 : vector<8x128xf32>
    %271 = math.exp %270 : vector<8x128xf32>
    %cst_71 = arith.constant 1.000000e+00 : f32
    %272 = vector.broadcast %cst_71 : f32 to vector<8x128xf32>
    %273 = arith.addf %272, %271 : vector<8x128xf32>
    %274 = arith.divf %272, %273 : vector<8x128xf32>
    %275 = vector.extract_strided_slice %268 {offsets = [0, 128], sizes = [8, 128], strides = [1, 1]} : vector<8x512xf32> to vector<8x128xf32>
    %276 = arith.negf %275 : vector<8x128xf32>
    %277 = math.exp %276 : vector<8x128xf32>
    %cst_72 = arith.constant 1.000000e+00 : f32
    %278 = vector.broadcast %cst_72 : f32 to vector<8x128xf32>
    %279 = arith.addf %278, %277 : vector<8x128xf32>
    %280 = arith.divf %278, %279 : vector<8x128xf32>
    %281 = vector.extract_strided_slice %268 {offsets = [0, 256], sizes = [8, 128], strides = [1, 1]} : vector<8x512xf32> to vector<8x128xf32>
    %282 = math.tanh %281 : vector<8x128xf32>
    %283 = vector.extract_strided_slice %268 {offsets = [0, 384], sizes = [8, 128], strides = [1, 1]} : vector<8x512xf32> to vector<8x128xf32>
    %284 = arith.negf %283 : vector<8x128xf32>
    %285 = math.exp %284 : vector<8x128xf32>
    %cst_73 = arith.constant 1.000000e+00 : f32
    %286 = vector.broadcast %cst_73 : f32 to vector<8x128xf32>
    %287 = arith.addf %286, %285 : vector<8x128xf32>
    %288 = arith.divf %286, %287 : vector<8x128xf32>
    %289 = arith.mulf %280, %261 : vector<8x128xf32>
    %290 = arith.mulf %274, %282 : vector<8x128xf32>
    %291 = arith.addf %289, %290 : vector<8x128xf32>
    %292 = math.tanh %291 : vector<8x128xf32>
    %293 = arith.mulf %288, %292 : vector<8x128xf32>
    %294 = vector.broadcast %c7_i32 : i32 to vector<8x128xi32>
    %295 = arith.cmpi slt, %294, %7 : vector<8x128xi32>
    %296 = arith.select %295, %293, %260 : vector<8x128xi1>, vector<8x128xf32>
    %297 = arith.select %295, %291, %261 : vector<8x128xi1>, vector<8x128xf32>
    %c8_i32_74 = arith.constant 8 : i32
    %298 = vector.shape_cast %7 : vector<8x128xi32> to vector<1x8x128xi32>
    %cst_75 = arith.constant dense<-2147483648> : vector<1xi32>
    %299 = vector.multi_reduction <maxsi>, %298, %cst_75 [1, 2] : vector<1x8x128xi32> to vector<1xi32>
    %300 = vector.shape_cast %299 : vector<1xi32> to vector<1x1x1xi32>
    %301 = vector.extract %300[0, 0, 0] : i32 from vector<1x1x1xi32>
    %302 = vector.broadcast %301 : i32 to vector<8x128xi32>
    %303 = arith.cmpi eq, %7, %302 : vector<8x128xi32>
    %cst_76 = arith.constant 0.000000e+00 : f32
    %304 = vector.broadcast %cst_76 : f32 to vector<8x128xf32>
    %305 = arith.select %303, %296, %304 : vector<8x128xi1>, vector<8x128xf32>
    %c0_77 = arith.constant 0 : index
    %c0_78 = arith.constant 0 : index
    %306 = vector.load %arg5[%c0_77, %c0_78] : memref<128x128xf32, #tpu.memory_space<vmem>>, vector<128x128xf32>
    %cst_79 = arith.constant dense<0.000000e+00> : vector<8x128xf32>
    %307 = tpu.matmul %305, %306, %cst_79 {dimension_numbers = #tpu.dot_dimension_numbers<[1], [0], [0], [1], [0, 0, 1, 1], [], []>} : vector<8x128xf32>, vector<128x128xf32>, vector<8x128xf32> -> vector<8x128xf32>
    %c0_80 = arith.constant 0 : index
    %c0_81 = arith.constant 0 : index
    %308 = vector.load %arg6[%c0_80, %c0_81] : memref<1x128xf32, #tpu.memory_space<vmem>>, vector<1x128xf32>
    %309 = vector.broadcast %308 : vector<1x128xf32> to vector<8x128xf32>
    %310 = arith.addf %307, %309 : vector<8x128xf32>
    %c0_82 = arith.constant 0 : index
    %c0_83 = arith.constant 0 : index
    %311 = vector.load %arg7[%c0_82, %c0_83] : memref<8x128xf32, #tpu.memory_space<vmem>>, vector<8x128xf32>
    tpu.vector_store %arg7[%c0_82, %c0_83], %310 {strides = array<i32>} : memref<8x128xf32, #tpu.memory_space<vmem>>, vector<8x128xf32>,
    return
  }
}

</mosaic_0001>

<llo_original>
// kernel: tpu_custom_call.1
$region0: #{tpu_custom_call.1}
  #allocation0 [shape = 'u32[]', space=smem, size = 0x4, offset = 0x4, fixed_abs, tag = 'smem constant byte address 0x4 - core index']
  #allocation1 [shape = 'u32[72,128]{1,0:T(1,128)}', space=vmem, size = 0x9000, scoped, tag = 'internal scratch']
  #allocation2 [shape = 'f32[64,512]{1,0:T(8,128)}', space=vmem, size = 0x20000, scoped, tag = 'scratch operand']
  %s0 = inlined_call_operand.vmem [shape: f32[64,8], index: 0, kind: input, shape index: {}]
  %s1 = inlined_call_operand.vmem [shape: s32[8,128], index: 1, kind: input, shape index: {}]
  %s2 = inlined_call_operand.vmem [shape: f32[8,512], index: 2, kind: input, shape index: {}]
  %s3 = inlined_call_operand.hbm [shape: f32[128,512], index: 3, kind: input, shape index: {}]
  %s4 = inlined_call_operand.vmem [shape: f32[1,512], index: 4, kind: input, shape index: {}]
  %s5 = inlined_call_operand.hbm [shape: f32[128,128], index: 5, kind: input, shape index: {}]
  %s6 = inlined_call_operand.vmem [shape: f32[1,128], index: 6, kind: input, shape index: {}]
  %s7 = inlined_call_operand.hbm [shape: f32[8,128], index: 7, kind: output, shape index: {}]
  %s8 = sld [smem:[#allocation0]]
  $region46: #{tpu_custom_call.1} parent=0
    _
  %s10 = ssub.s32 1, %s8
  %s11 = scalar_select 0, %s10, %s8
  $region1: #{tpu_custom_call.1} parent=0
    #allocation3 [shape = 'u8[262144]{0}', space=vmem, size = 0x40000, scoped, tag = 'input window, operand 3, single buffered']
    #allocation4 [shape = 's32[1]{0}', space=sflag, size = 0x4, scoped, tag = 'scoped memory for tpu_custom_call.1']
    #allocation5 [shape = 's32[1]{0}', space=sflag, size = 0x4, scoped, tag = 'scoped memory for tpu_custom_call.1']
    #allocation6 [shape = 'u8[65536]{0}', space=vmem, size = 0x10000, scoped, tag = 'input window, operand 5, single buffered']
    #allocation7 [shape = 's32[1]{0}', space=sflag, size = 0x4, scoped, tag = 'scoped memory for tpu_custom_call.1']
    #allocation8 [shape = 'u8[4096]{0}', space=vmem, size = 0x1000, scoped, tag = 'output window, operand 0, single buffered']
    %12 = vsyncpa [#allocation4], 0
    %13 = vsyncpa [#allocation7], 0
    %14 = vsyncpa [#allocation5], 0
    // Predicated region
    $region2: #{tpu_custom_call.1} parent=1 // pred_check
      _
    $region3: #{tpu_custom_call.1} parent=1 // pred_check_branch
      %16 = sbr.rel (0) target = $region5
    $region4: #{tpu_custom_call.1} parent=1 // pred_region
      _
    $region5: #{tpu_custom_call.1} parent=1 // pred_fallthru
      _
    // Predicated region
    $region6: #{tpu_custom_call.1} parent=1 // pred_check
      _
    $region7: #{tpu_custom_call.1} parent=1 // pred_check_branch
      %18 = sbr.rel (0) target = $region9
    $region8: #{tpu_custom_call.1} parent=1 // pred_region
      _
    $region9: #{tpu_custom_call.1} parent=1 // pred_fallthru
      _
    // Predicated region
    $region10: #{tpu_custom_call.1} parent=1 // pred_check
      _
    $region11: #{tpu_custom_call.1} parent=1 // pred_check_branch
      %20 = sbr.rel (0) target = $region13
    $region12: #{tpu_custom_call.1} parent=1 // pred_region
      _
    $region13: #{tpu_custom_call.1} parent=1 // pred_fallthru
      _
    // Predicated region
    $region14: #{tpu_custom_call.1} parent=1 // pred_check
      _
    $region15: #{tpu_custom_call.1} parent=1 // pred_check_branch
      %22 = sbr.rel (0) target = $region17
    $region16: #{tpu_custom_call.1} parent=1 // pred_region
      %24 = vsyncadd [#allocation4], 0
      %s25 = sshll.u32 %s3, 4
      %s26 = int_to_ptr.hbm [resolvable:$true] %s25
      %s27 = sshll.u32 [#allocation3], 4
      %s28 = int_to_ptr.vmem [resolvable:$true] %s27
      %33 = dma.hbm_to_vmem [thread:$0]  %s26, 8192, %s28, [#allocation4], 512, 512, 32
    $region17: #{tpu_custom_call.1} parent=1 // pred_fallthru
      _
    // Predicated region
    $region18: #{tpu_custom_call.1} parent=1 // pred_check
      _
    $region19: #{tpu_custom_call.1} parent=1 // pred_check_branch
      %35 = sbr.rel (0) target = $region21
    $region20: #{tpu_custom_call.1} parent=1 // pred_region
      _
    $region21: #{tpu_custom_call.1} parent=1 // pred_fallthru
      _
    // Predicated region
    $region22: #{tpu_custom_call.1} parent=1 // pred_check
      _
    $region23: #{tpu_custom_call.1} parent=1 // pred_check_branch
      %37 = sbr.rel (0) target = $region25
    $region24: #{tpu_custom_call.1} parent=1 // pred_region
      %39 = vsyncadd [#allocation7], 0
      %s40 = sshll.u32 %s5, 4
      %s41 = int_to_ptr.hbm [resolvable:$true] %s40
      %s42 = sshll.u32 [#allocation6], 4
      %s43 = int_to_ptr.vmem [resolvable:$true] %s42
      %48 = dma.hbm_to_vmem [thread:$0]  %s41, 2048, %s43, [#allocation7], 128, 128, 8
    $region25: #{tpu_custom_call.1} parent=1 // pred_fallthru
      _
    // Predicated region
    $region26: #{tpu_custom_call.1} parent=1 // pred_check
      _
    $region27: #{tpu_custom_call.1} parent=1 // pred_check_branch
      %50 = sbr.rel (0) target = $region29
    $region28: #{tpu_custom_call.1} parent=1 // pred_region
      _
    $region29: #{tpu_custom_call.1} parent=1 // pred_fallthru
      _
    // Predicated region
    $region30: #{tpu_custom_call.1} parent=1 // pred_check
      _
    $region31: #{tpu_custom_call.1} parent=1 // pred_check_branch
      %52 = sbr.rel (0) target = $region33
    $region32: #{tpu_custom_call.1} parent=1 // pred_region
      %54 = dma.done [#allocation4], 8192
    $region33: #{tpu_custom_call.1} parent=1 // pred_fallthru
      _
    // Predicated region
    $region34: #{tpu_custom_call.1} parent=1 // pred_check
      _
    $region35: #{tpu_custom_call.1} parent=1 // pred_check_branch
      %56 = sbr.rel (0) target = $region37
    $region36: #{tpu_custom_call.1} parent=1 // pred_region
      %58 = dma.done [#allocation7], 2048
    $region37: #{tpu_custom_call.1} parent=1 // pred_fallthru
      _
    %v59 = vld [vmem:[%s0] sm:$0xff]
    %v60 = vld [vmem:[%s0 + $0x8] sm:$0xff]
    %v61 = vld [vmem:[%s0 + $0x10] sm:$0xff]
    %v62 = vld [vmem:[%s0 + $0x18] sm:$0xff]
    %v63 = vld [vmem:[%s0 + $0x20] sm:$0xff]
    %v64 = vld [vmem:[%s0 + $0x28] sm:$0xff]
    %v65 = vld [vmem:[%s0 + $0x30] sm:$0xff]
    %v66 = vld [vmem:[%s0 + $0x38] sm:$0xff]
    %v67 = vld [vmem:[%s2] sm:$0xff]
    %v68 = vld [vmem:[%s2 + $0x8] sm:$0xff]
    %v69 = vld [vmem:[%s2 + $0x10] sm:$0xff]
    %v70 = vld [vmem:[%s2 + $0x18] sm:$0xff]
    %v71 = vld [vmem:[%s4] sm:$0xf]
    %v73 = vperm.slane %v71, 0
    %v74 = vperm.slane %v71, 1
    %v75 = vperm.slane %v71, 2
    %v76 = vperm.slane %v71, 3
    %vm81 = vcmask 64512
    %v83 = vsel %vm81, %v59, 0
    %v86 = vsel %vm81, %v60, 0
    %v89 = vsel %vm81, %v61, 0
    %v92 = vsel %vm81, %v62, 0
    %v95 = vsel %vm81, %v63, 0
    %v98 = vsel %vm81, %v64, 0
    %v101 = vsel %vm81, %v65, 0
    %v104 = vsel %vm81, %v66, 0
    %106 = vmatpush.msra.mxu0 0.0
    %107 = vmatpush.msra.mxu0 0.0
    %108 = vmatpush.msra.mxu0 0.0
    %109 = vmatpush.msra.mxu0 0.0
    %110 = vmatpush.msra.mxu0 0.0
    %111 = vmatpush.msra.mxu0 0.0
    %112 = vmatpush.msra.mxu0 0.0
    %113 = vmatpush.msra.mxu0 0.0
    %114 = vmatpush.msra.mxu0 0.0
    %115 = vmatpush.msra.mxu0 0.0
    %116 = vmatpush.msra.mxu0 0.0
    %117 = vmatpush.msra.mxu0 0.0
    %118 = vmatpush.msra.mxu0 0.0
    %119 = vmatpush.msra.mxu0 0.0
    %120 = vmatpush.msra.mxu0 0.0
    %121 = vmatpush.msra.mxu0 %v67
    %122 = vmatmul.f32.gmra.mxu0 %v83
    %v123 = vpop.f32.mrf.mxu0
    %v124 = vadd.f32 %v73, %v123
    %125 = vmatmul.f32.gmra.mxu0 %v86
    %v126 = vpop.f32.mrf.mxu0
    %v127 = vadd.f32 %v73, %v126
    %128 = vmatmul.f32.gmra.mxu0 %v89
    %v129 = vpop.f32.mrf.mxu0
    %v130 = vadd.f32 %v73, %v129
    %131 = vmatmul.f32.gmra.mxu0 %v92
    %v132 = vpop.f32.mrf.mxu0
    %v133 = vadd.f32 %v73, %v132
    %134 = vmatmul.f32.gmra.mxu0 %v95
    %v135 = vpop.f32.mrf.mxu0
    %v136 = vadd.f32 %v73, %v135
    %137 = vmatmul.f32.gmra.mxu0 %v98
    %v138 = vpop.f32.mrf.mxu0
    %v139 = vadd.f32 %v73, %v138
    %140 = vmatmul.f32.gmra.mxu0 %v101
    %v141 = vpop.f32.mrf.mxu0
    %v142 = vadd.f32 %v73, %v141
    %143 = vmatmul.f32.gmra.mxu0 %v104
    %v144 = vpop.f32.mrf.mxu0
    %v145 = vadd.f32 %v73, %v144
    %146 = vdwg.mxu0
    %147 = vmatpush.msra.mxu0 0.0
    %148 = vmatpush.msra.mxu0 0.0
    %149 = vmatpush.msra.mxu0 0.0
    %150 = vmatpush.msra.mxu0 0.0
    %151 = vmatpush.msra.mxu0 0.0
    %152 = vmatpush.msra.mxu0 0.0
    %153 = vmatpush.msra.mxu0 0.0
    %154 = vmatpush.msra.mxu0 0.0
    %155 = vmatpush.msra.mxu0 0.0
    %156 = vmatpush.msra.mxu0 0.0
    %157 = vmatpush.msra.mxu0 0.0
    %158 = vmatpush.msra.mxu0 0.0
    %159 = vmatpush.msra.mxu0 0.0
    %160 = vmatpush.msra.mxu0 0.0
    %161 = vmatpush.msra.mxu0 0.0
    %162 = vmatpush.msra.mxu0 %v68
    %163 = vmatmul.f32.gmra.mxu0 %v83
    %v164 = vpop.f32.mrf.mxu0
    %v165 = vadd.f32 %v74, %v164
    %166 = vmatmul.f32.gmra.mxu0 %v86
    %v167 = vpop.f32.mrf.mxu0
    %v168 = vadd.f32 %v74, %v167
    %169 = vmatmul.f32.gmra.mxu0 %v89
    %v170 = vpop.f32.mrf.mxu0
    %v171 = vadd.f32 %v74, %v170
    %172 = vmatmul.f32.gmra.mxu0 %v92
    %v173 = vpop.f32.mrf.mxu0
    %v174 = vadd.f32 %v74, %v173
    %175 = vmatmul.f32.gmra.mxu0 %v95
    %v176 = vpop.f32.mrf.mxu0
    %v177 = vadd.f32 %v74, %v176
    %178 = vmatmul.f32.gmra.mxu0 %v98
    %v179 = vpop.f32.mrf.mxu0
    %v180 = vadd.f32 %v74, %v179
    %181 = vmatmul.f32.gmra.mxu0 %v101
    %v182 = vpop.f32.mrf.mxu0
    %v183 = vadd.f32 %v74, %v182
    %184 = vmatmul.f32.gmra.mxu0 %v104
    %v185 = vpop.f32.mrf.mxu0
    %v186 = vadd.f32 %v74, %v185
    %187 = vdwg.mxu0
    %188 = vmatpush.msra.mxu0 0.0
    %189 = vmatpush.msra.mxu0 0.0
    %190 = vmatpush.msra.mxu0 0.0
    %191 = vmatpush.msra.mxu0 0.0
    %192 = vmatpush.msra.mxu0 0.0
    %193 = vmatpush.msra.mxu0 0.0
    %194 = vmatpush.msra.mxu0 0.0
    %195 = vmatpush.msra.mxu0 0.0
    %196 = vmatpush.msra.mxu0 0.0
    %197 = vmatpush.msra.mxu0 0.0
    %198 = vmatpush.msra.mxu0 0.0
    %199 = vmatpush.msra.mxu0 0.0
    %200 = vmatpush.msra.mxu0 0.0
    %201 = vmatpush.msra.mxu0 0.0
    %202 = vmatpush.msra.mxu0 0.0
    %203 = vmatpush.msra.mxu0 %v69
    %204 = vmatmul.f32.gmra.mxu0 %v83
    %v205 = vpop.f32.mrf.mxu0
    %v206 = vadd.f32 %v75, %v205
    %207 = vmatmul.f32.gmra.mxu0 %v86
    %v208 = vpop.f32.mrf.mxu0
    %v209 = vadd.f32 %v75, %v208
    %210 = vmatmul.f32.gmra.mxu0 %v89
    %v211 = vpop.f32.mrf.mxu0
    %v212 = vadd.f32 %v75, %v211
    %213 = vmatmul.f32.gmra.mxu0 %v92
    %v214 = vpop.f32.mrf.mxu0
    %v215 = vadd.f32 %v75, %v214
    %216 = vmatmul.f32.gmra.mxu0 %v95
    %v217 = vpop.f32.mrf.mxu0
    %v218 = vadd.f32 %v75, %v217
    %219 = vmatmul.f32.gmra.mxu0 %v98
    %v220 = vpop.f32.mrf.mxu0
    %v221 = vadd.f32 %v75, %v220
    %222 = vmatmul.f32.gmra.mxu0 %v101
    %v223 = vpop.f32.mrf.mxu0
    %v224 = vadd.f32 %v75, %v223
    %225 = vmatmul.f32.gmra.mxu0 %v104
    %v226 = vpop.f32.mrf.mxu0
    %v227 = vadd.f32 %v75, %v226
    %228 = vdwg.mxu0
    %229 = vmatpush.msra.mxu0 0.0
    %230 = vmatpush.msra.mxu0 0.0
    %231 = vmatpush.msra.mxu0 0.0
    %232 = vmatpush.msra.mxu0 0.0
    %233 = vmatpush.msra.mxu0 0.0
    %234 = vmatpush.msra.mxu0 0.0
    %235 = vmatpush.msra.mxu0 0.0
    %236 = vmatpush.msra.mxu0 0.0
    %237 = vmatpush.msra.mxu0 0.0
    %238 = vmatpush.msra.mxu0 0.0
    %239 = vmatpush.msra.mxu0 0.0
    %240 = vmatpush.msra.mxu0 0.0
    %241 = vmatpush.msra.mxu0 0.0
    %242 = vmatpush.msra.mxu0 0.0
    %243 = vmatpush.msra.mxu0 0.0
    %244 = vmatpush.msra.mxu0 %v70
    %245 = vmatmul.f32.gmra.mxu0 %v83
    %v246 = vpop.f32.mrf.mxu0
    %v247 = vadd.f32 %v76, %v246
    %248 = vmatmul.f32.gmra.mxu0 %v86
    %v249 = vpop.f32.mrf.mxu0
    %v250 = vadd.f32 %v76, %v249
    %251 = vmatmul.f32.gmra.mxu0 %v89
    %v252 = vpop.f32.mrf.mxu0
    %v253 = vadd.f32 %v76, %v252
    %254 = vmatmul.f32.gmra.mxu0 %v92
    %v255 = vpop.f32.mrf.mxu0
    %v256 = vadd.f32 %v76, %v255
    %257 = vmatmul.f32.gmra.mxu0 %v95
    %v258 = vpop.f32.mrf.mxu0
    %v259 = vadd.f32 %v76, %v258
    %260 = vmatmul.f32.gmra.mxu0 %v98
    %v261 = vpop.f32.mrf.mxu0
    %v262 = vadd.f32 %v76, %v261
    %263 = vmatmul.f32.gmra.mxu0 %v101
    %v264 = vpop.f32.mrf.mxu0
    %v265 = vadd.f32 %v76, %v264
    %266 = vmatmul.f32.gmra.mxu0 %v104
    %v267 = vpop.f32.mrf.mxu0
    %v268 = vadd.f32 %v76, %v267
    %269 = vdwg.mxu0
    %270 = vst [vmem:[#allocation2] sm:$0xff] %v124
    %271 = vst [vmem:[#allocation2 + $0x8] sm:$0xff] %v165
    %272 = vst [vmem:[#allocation2 + $0x10] sm:$0xff] %v206
    %273 = vst [vmem:[#allocation2 + $0x18] sm:$0xff] %v247
    %274 = vst [vmem:[#allocation2 + $0x20] sm:$0xff] %v127
    %275 = vst [vmem:[#allocation2 + $0x28] sm:$0xff] %v168
    %276 = vst [vmem:[#allocation2 + $0x30] sm:$0xff] %v209
    %277 = vst [vmem:[#allocation2 + $0x38] sm:$0xff] %v250
    %278 = vst [vmem:[#allocation2 + $0x40] sm:$0xff] %v130
    %279 = vst [vmem:[#allocation2 + $0x48] sm:$0xff] %v171
    %280 = vst [vmem:[#allocation2 + $0x50] sm:$0xff] %v212
    %281 = vst [vmem:[#allocation2 + $0x58] sm:$0xff] %v253
    %282 = vst [vmem:[#allocation2 + $0x60] sm:$0xff] %v133
    %283 = vst [vmem:[#allocation2 + $0x68] sm:$0xff] %v174
    %284 = vst [vmem:[#allocation2 + $0x70] sm:$0xff] %v215
    %285 = vst [vmem:[#allocation2 + $0x78] sm:$0xff] %v256
    %286 = vst [vmem:[#allocation2 + $0x80] sm:$0xff] %v136
    %287 = vst [vmem:[#allocation2 + $0x88] sm:$0xff] %v177
    %288 = vst [vmem:[#allocation2 + $0x90] sm:$0xff] %v218
    %289 = vst [vmem:[#allocation2 + $0x98] sm:$0xff] %v259
    %290 = vst [vmem:[#allocation2 + $0xa0] sm:$0xff] %v139
    %291 = vst [vmem:[#allocation2 + $0xa8] sm:$0xff] %v180
    %292 = vst [vmem:[#allocation2 + $0xb0] sm:$0xff] %v221
    %293 = vst [vmem:[#allocation2 + $0xb8] sm:$0xff] %v262
    %294 = vst [vmem:[#allocation2 + $0xc0] sm:$0xff] %v142
    %295 = vst [vmem:[#allocation2 + $0xc8] sm:$0xff] %v183
    %296 = vst [vmem:[#allocation2 + $0xd0] sm:$0xff] %v224
    %297 = vst [vmem:[#allocation2 + $0xd8] sm:$0xff] %v265
    %298 = vst [vmem:[#allocation2 + $0xe0] sm:$0xff] %v145
    %299 = vst [vmem:[#allocation2 + $0xe8] sm:$0xff] %v186
    %300 = vst [vmem:[#allocation2 + $0xf0] sm:$0xff] %v227
    %301 = vst [vmem:[#allocation2 + $0xf8] sm:$0xff] %v268
    %v302 = vld [vmem:[%s1] sm:$0xff]
    %s303 = smul.u32 0, 4
    %s304 = smul.addr %s303, 8
    %s305 = scalar_lea.vmem [#allocation2], %s304
    %v306 = vld [vmem:[%s305] sm:$0xff]
    %v307 = vld [vmem:[%s305 + $0x8] sm:$0xff]
    %v308 = vld [vmem:[%s305 + $0x10] sm:$0xff]
    %v309 = vld [vmem:[%s305 + $0x18] sm:$0xff]
    %v310 = vld [vmem:[#allocation3] sm:$0xff]
    %v311 = vld [vmem:[#allocation3 + $0x8] sm:$0xff]
    %v312 = vld [vmem:[#allocation3 + $0x10] sm:$0xff]
    %v313 = vld [vmem:[#allocation3 + $0x18] sm:$0xff]
    %v314 = vld [vmem:[#allocation3 + $0x20] sm:$0xff]
    %v315 = vld [vmem:[#allocation3 + $0x28] sm:$0xff]
    %v316 = vld [vmem:[#allocation3 + $0x30] sm:$0xff]
    %v317 = vld [vmem:[#allocation3 + $0x38] sm:$0xff]
    %v318 = vld [vmem:[#allocation3 + $0x40] sm:$0xff]
    %v319 = vld [vmem:[#allocation3 + $0x48] sm:$0xff]
    %v320 = vld [vmem:[#allocation3 + $0x50] sm:$0xff]
    %v321 = vld [vmem:[#allocation3 + $0x58] sm:$0xff]
    %v322 = vld [vmem:[#allocation3 + $0x60] sm:$0xff]
    %v323 = vld [vmem:[#allocation3 + $0x68] sm:$0xff]
    %v324 = vld [vmem:[#allocation3 + $0x70] sm:$0xff]
    %v325 = vld [vmem:[#allocation3 + $0x78] sm:$0xff]
    %v326 = vld [vmem:[#allocation3 + $0x80] sm:$0xff]
    %v327 = vld [vmem:[#allocation3 + $0x88] sm:$0xff]
    %v328 = vld [vmem:[#allocation3 + $0x90] sm:$0xff]
    %v329 = vld [vmem:[#allocation3 + $0x98] sm:$0xff]
    %v330 = vld [vmem:[#allocation3 + $0xa0] sm:$0xff]
    %v331 = vld [vmem:[#allocation3 + $0xa8] sm:$0xff]
    %v332 = vld [vmem:[#allocation3 + $0xb0] sm:$0xff]
    %v333 = vld [vmem:[#allocation3 + $0xb8] sm:$0xff]
    %v334 = vld [vmem:[#allocation3 + $0xc0] sm:$0xff]
    %v335 = vld [vmem:[#allocation3 + $0xc8] sm:$0xff]
    %v336 = vld [vmem:[#allocation3 + $0xd0] sm:$0xff]
    %v337 = vld [vmem:[#allocation3 + $0xd8] sm:$0xff]
    %v338 = vld [vmem:[#allocation3 + $0xe0] sm:$0xff]
    %v339 = vld [vmem:[#allocation3 + $0xe8] sm:$0xff]
    %v340 = vld [vmem:[#allocation3 + $0xf0] sm:$0xff]
    %v341 = vld [vmem:[#allocation3 + $0xf8] sm:$0xff]
    %v342 = vld [vmem:[#allocation3 + $0x100] sm:$0xff]
    %v343 = vld [vmem:[#allocation3 + $0x108] sm:$0xff]
    %v344 = vld [vmem:[#allocation3 + $0x110] sm:$0xff]
    %v345 = vld [vmem:[#allocation3 + $0x118] sm:$0xff]
    %v346 = vld [vmem:[#allocation3 + $0x120] sm:$0xff]
    %v347 = vld [vmem:[#allocation3 + $0x128] sm:$0xff]
    %v348 = vld [vmem:[#allocation3 + $0x130] sm:$0xff]
    %v349 = vld [vmem:[#allocation3 + $0x138] sm:$0xff]
    %v350 = vld [vmem:[#allocation3 + $0x140] sm:$0xff]
    %v351 = vld [vmem:[#allocation3 + $0x148] sm:$0xff]
    %v352 = vld [vmem:[#allocation3 + $0x150] sm:$0xff]
    %v353 = vld [vmem:[#allocation3 + $0x158] sm:$0xff]
    %v354 = vld [vmem:[#allocation3 + $0x160] sm:$0xff]
    %v355 = vld [vmem:[#allocation3 + $0x168] sm:$0xff]
    %v356 = vld [vmem:[#allocation3 + $0x170] sm:$0xff]
    %v357 = vld [vmem:[#allocation3 + $0x178] sm:$0xff]
    %v358 = vld [vmem:[#allocation3 + $0x180] sm:$0xff]
    %v359 = vld [vmem:[#allocation3 + $0x188] sm:$0xff]
    %v360 = vld [vmem:[#allocation3 + $0x190] sm:$0xff]
    %v361 = vld [vmem:[#allocation3 + $0x198] sm:$0xff]
    %v362 = vld [vmem:[#allocation3 + $0x1a0] sm:$0xff]
    %v363 = vld [vmem:[#allocation3 + $0x1a8] sm:$0xff]
    %v364 = vld [vmem:[#allocation3 + $0x1b0] sm:$0xff]
    %v365 = vld [vmem:[#allocation3 + $0x1b8] sm:$0xff]
    %v366 = vld [vmem:[#allocation3 + $0x1c0] sm:$0xff]
    %v367 = vld [vmem:[#allocation3 + $0x1c8] sm:$0xff]
    %v368 = vld [vmem:[#allocation3 + $0x1d0] sm:$0xff]
    %v369 = vld [vmem:[#allocation3 + $0x1d8] sm:$0xff]
    %v370 = vld [vmem:[#allocation3 + $0x1e0] sm:$0xff]
    %v371 = vld [vmem:[#allocation3 + $0x1e8] sm:$0xff]
    %v372 = vld [vmem:[#allocation3 + $0x1f0] sm:$0xff]
    %v373 = vld [vmem:[#allocation3 + $0x1f8] sm:$0xff]
    %374 = vmatpush.msra.mxu0 %v370
    %375 = vmatpush.msra.mxu0 %v366
    %376 = vmatpush.msra.mxu0 %v362
    %377 = vmatpush.msra.mxu0 %v358
    %378 = vmatpush.msra.mxu0 %v354
    %379 = vmatpush.msra.mxu0 %v350
    %380 = vmatpush.msra.mxu0 %v346
    %381 = vmatpush.msra.mxu0 %v342
    %382 = vmatpush.msra.mxu0 %v338
    %383 = vmatpush.msra.mxu0 %v334
    %384 = vmatpush.msra.mxu0 %v330
    %385 = vmatpush.msra.mxu0 %v326
    %386 = vmatpush.msra.mxu0 %v322
    %387 = vmatpush.msra.mxu0 %v318
    %388 = vmatpush.msra.mxu0 %v314
    %389 = vmatpush.msra.mxu0 %v310
    %390 = vmatmul.f32.gmra.mxu0 0.0
    %v391 = vpop.f32.mrf.mxu0
    %v392 = vadd.f32 0.0, %v391
    %393 = vdwg.mxu0
    %394 = vmatpush.msra.mxu0 %v371
    %395 = vmatpush.msra.mxu0 %v367
    %396 = vmatpush.msra.mxu0 %v363
    %397 = vmatpush.msra.mxu0 %v359
    %398 = vmatpush.msra.mxu0 %v355
    %399 = vmatpush.msra.mxu0 %v351
    %400 = vmatpush.msra.mxu0 %v347
    %401 = vmatpush.msra.mxu0 %v343
    %402 = vmatpush.msra.mxu0 %v339
    %403 = vmatpush.msra.mxu0 %v335
    %404 = vmatpush.msra.mxu0 %v331
    %405 = vmatpush.msra.mxu0 %v327
    %406 = vmatpush.msra.mxu0 %v323
    %407 = vmatpush.msra.mxu0 %v319
    %408 = vmatpush.msra.mxu0 %v315
    %409 = vmatpush.msra.mxu0 %v311
    %410 = vmatmul.f32.gmra.mxu0 0.0
    %v411 = vpop.f32.mrf.mxu0
    %v412 = vadd.f32 0.0, %v411
    %413 = vdwg.mxu0
    %414 = vmatpush.msra.mxu0 %v372
    %415 = vmatpush.msra.mxu0 %v368
    %416 = vmatpush.msra.mxu0 %v364
    %417 = vmatpush.msra.mxu0 %v360
    %418 = vmatpush.msra.mxu0 %v356
    %419 = vmatpush.msra.mxu0 %v352
    %420 = vmatpush.msra.mxu0 %v348
    %421 = vmatpush.msra.mxu0 %v344
    %422 = vmatpush.msra.mxu0 %v340
    %423 = vmatpush.msra.mxu0 %v336
    %424 = vmatpush.msra.mxu0 %v332
    %425 = vmatpush.msra.mxu0 %v328
    %426 = vmatpush.msra.mxu0 %v324
    %427 = vmatpush.msra.mxu0 %v320
    %428 = vmatpush.msra.mxu0 %v316
    %429 = vmatpush.msra.mxu0 %v312
    %430 = vmatmul.f32.gmra.mxu0 0.0
    %v431 = vpop.f32.mrf.mxu0
    %v432 = vadd.f32 0.0, %v431
    %433 = vdwg.mxu0
    %434 = vmatpush.msra.mxu0 %v373
    %435 = vmatpush.msra.mxu0 %v369
    %436 = vmatpush.msra.mxu0 %v365
    %437 = vmatpush.msra.mxu0 %v361
    %438 = vmatpush.msra.mxu0 %v357
    %439 = vmatpush.msra.mxu0 %v353
    %440 = vmatpush.msra.mxu0 %v349
    %441 = vmatpush.msra.mxu0 %v345
    %442 = vmatpush.msra.mxu0 %v341
    %443 = vmatpush.msra.mxu0 %v337
    %444 = vmatpush.msra.mxu0 %v333
    %445 = vmatpush.msra.mxu0 %v329
    %446 = vmatpush.msra.mxu0 %v325
    %447 = vmatpush.msra.mxu0 %v321
    %448 = vmatpush.msra.mxu0 %v317
    %449 = vmatpush.msra.mxu0 %v313
    %450 = vmatmul.f32.gmra.mxu0 0.0
    %v451 = vpop.f32.mrf.mxu0
    %v452 = vadd.f32 0.0, %v451
    %453 = vdwg.mxu0
    %v454 = vadd.f32 %v306, %v392
    %v455 = vadd.f32 %v307, %v412
    %v456 = vadd.f32 %v308, %v432
    %v457 = vadd.f32 %v309, %v452
    %v458 = vxor.u32 %v454, 2147483648
    %v459 = vmul.f32 %v458, 1.442695
    %v460 = vpow.pop %v459
    %v461 = vadd.f32 %v460, 1.0
    %v462 = vrcp.pop %v461
    %v463 = vmul.f32 %v461, %v462
    %v464 = vsub.f32 1.0, %v463
    %v465 = vmul.f32 %v462, %v464
    %v466 = vadd.f32 %v462, %v465
    %vm467 = vweird.f32 %v461
    %vm468 = vweird.f32 %v462
    %vm469 = vmor %vm467, %vm468
    %v470 = vsel %vm469, %v462, %v466
    %v471 = vand.u32 2147483647, %v461
    %vm472 = vcmp.eq.f32.partialorder %v471, 8.507059e+37
    %v473 = vand.u32 %v461, 2147483648
    %v474 = vor.u32 1.1754944e-38, %v473
    %v475 = vsel %vm472, %v474, %v470
    %v476 = vmul.f32 1.0, %v475
    %v477 = vxor.u32 %v455, 2147483648
    %v478 = vmul.f32 %v477, 1.442695
    %v479 = vpow.pop %v478
    %v480 = vadd.f32 %v479, 1.0
    %v481 = vrcp.pop %v480
    %v482 = vmul.f32 %v480, %v481
    %v483 = vsub.f32 1.0, %v482
    %v484 = vmul.f32 %v481, %v483
    %v485 = vadd.f32 %v481, %v484
    %vm486 = vweird.f32 %v480
    %vm487 = vweird.f32 %v481
    %vm488 = vmor %vm486, %vm487
    %v489 = vsel %vm488, %v481, %v485
    %v490 = vand.u32 2147483647, %v480
    %vm491 = vcmp.eq.f32.partialorder %v490, 8.507059e+37
    %v492 = vand.u32 %v480, 2147483648
    %v493 = vor.u32 1.1754944e-38, %v492
    %v494 = vsel %vm491, %v493, %v489
    %v495 = vmul.f32 1.0, %v494
    %v496 = vtanh.pop %v456
    %v497 = vxor.u32 %v457, 2147483648
    %v498 = vmul.f32 %v497, 1.442695
    %v499 = vpow.pop %v498
    %v500 = vadd.f32 %v499, 1.0
    %v501 = vrcp.pop %v500
    %v502 = vmul.f32 %v500, %v501
    %v503 = vsub.f32 1.0, %v502
    %v504 = vmul.f32 %v501, %v503
    %v505 = vadd.f32 %v501, %v504
    %vm506 = vweird.f32 %v500
    %vm507 = vweird.f32 %v501
    %vm508 = vmor %vm506, %vm507
    %v509 = vsel %vm508, %v501, %v505
    %v510 = vand.u32 2147483647, %v500
    %vm511 = vcmp.eq.f32.partialorder %v510, 8.507059e+37
    %v512 = vand.u32 %v500, 2147483648
    %v513 = vor.u32 1.1754944e-38, %v512
    %v514 = vsel %vm511, %v513, %v509
    %v515 = vmul.f32 1.0, %v514
    %v516 = vmul.f32 %v495, 0.0
    %v517 = vmul.f32 %v476, %v496
    %v518 = vadd.f32 %v516, %v517
    %v519 = vtanh.pop %v518
    %v520 = vmul.f32 %v515, %v519
    %vm521 = vcmp.gt.s32.totalorder %v302, 0
    %v522 = vsel %vm521, %v520, 0.0
    %v523 = vsel %vm521, %v518, 0.0
    %s524 = smul.u32 1, 4
    %s525 = smul.addr %s524, 8
    %s526 = scalar_lea.vmem [#allocation2], %s525
    %v527 = vld [vmem:[%s526] sm:$0xff]
    %v528 = vld [vmem:[%s526 + $0x8] sm:$0xff]
    %v529 = vld [vmem:[%s526 + $0x10] sm:$0xff]
    %v530 = vld [vmem:[%s526 + $0x18] sm:$0xff]
    %531 = vmatpush.msra.mxu0 %v370
    %532 = vmatpush.msra.mxu0 %v366
    %533 = vmatpush.msra.mxu0 %v362
    %534 = vmatpush.msra.mxu0 %v358
    %535 = vmatpush.msra.mxu0 %v354
    %536 = vmatpush.msra.mxu0 %v350
    %537 = vmatpush.msra.mxu0 %v346
    %538 = vmatpush.msra.mxu0 %v342
    %539 = vmatpush.msra.mxu0 %v338
    %540 = vmatpush.msra.mxu0 %v334
    %541 = vmatpush.msra.mxu0 %v330
    %542 = vmatpush.msra.mxu0 %v326
    %543 = vmatpush.msra.mxu0 %v322
    %544 = vmatpush.msra.mxu0 %v318
    %545 = vmatpush.msra.mxu0 %v314
    %546 = vmatpush.msra.mxu0 %v310
    %547 = vmatmul.f32.gmra.mxu0 %v522
    %v548 = vpop.f32.mrf.mxu0
    %v549 = vadd.f32 0.0, %v548
    %550 = vdwg.mxu0
    %551 = vmatpush.msra.mxu0 %v371
    %552 = vmatpush.msra.mxu0 %v367
    %553 = vmatpush.msra.mxu0 %v363
    %554 = vmatpush.msra.mxu0 %v359
    %555 = vmatpush.msra.mxu0 %v355
    %556 = vmatpush.msra.mxu0 %v351
    %557 = vmatpush.msra.mxu0 %v347
    %558 = vmatpush.msra.mxu0 %v343
    %559 = vmatpush.msra.mxu0 %v339
    %560 = vmatpush.msra.mxu0 %v335
    %561 = vmatpush.msra.mxu0 %v331
    %562 = vmatpush.msra.mxu0 %v327
    %563 = vmatpush.msra.mxu0 %v323
    %564 = vmatpush.msra.mxu0 %v319
    %565 = vmatpush.msra.mxu0 %v315
    %566 = vmatpush.msra.mxu0 %v311
    %567 = vmatmul.f32.gmra.mxu0 %v522
    %v568 = vpop.f32.mrf.mxu0
    %v569 = vadd.f32 0.0, %v568
    %570 = vdwg.mxu0
    %571 = vmatpush.msra.mxu0 %v372
    %572 = vmatpush.msra.mxu0 %v368
    %573 = vmatpush.msra.mxu0 %v364
    %574 = vmatpush.msra.mxu0 %v360
    %575 = vmatpush.msra.mxu0 %v356
    %576 = vmatpush.msra.mxu0 %v352
    %577 = vmatpush.msra.mxu0 %v348
    %578 = vmatpush.msra.mxu0 %v344
    %579 = vmatpush.msra.mxu0 %v340
    %580 = vmatpush.msra.mxu0 %v336
    %581 = vmatpush.msra.mxu0 %v332
    %582 = vmatpush.msra.mxu0 %v328
    %583 = vmatpush.msra.mxu0 %v324
    %584 = vmatpush.msra.mxu0 %v320
    %585 = vmatpush.msra.mxu0 %v316
    %586 = vmatpush.msra.mxu0 %v312
    %587 = vmatmul.f32.gmra.mxu0 %v522
    %v588 = vpop.f32.mrf.mxu0
    %v589 = vadd.f32 0.0, %v588
    %590 = vdwg.mxu0
    %591 = vmatpush.msra.mxu0 %v373
    %592 = vmatpush.msra.mxu0 %v369
    %593 = vmatpush.msra.mxu0 %v365
    %594 = vmatpush.msra.mxu0 %v361
    %595 = vmatpush.msra.mxu0 %v357
    %596 = vmatpush.msra.mxu0 %v353
    %597 = vmatpush.msra.mxu0 %v349
    %598 = vmatpush.msra.mxu0 %v345
    %599 = vmatpush.msra.mxu0 %v341
    %600 = vmatpush.msra.mxu0 %v337
    %601 = vmatpush.msra.mxu0 %v333
    %602 = vmatpush.msra.mxu0 %v329
    %603 = vmatpush.msra.mxu0 %v325
    %604 = vmatpush.msra.mxu0 %v321
    %605 = vmatpush.msra.mxu0 %v317
    %606 = vmatpush.msra.mxu0 %v313
    %607 = vmatmul.f32.gmra.mxu0 %v522
    %v608 = vpop.f32.mrf.mxu0
    %v609 = vadd.f32 0.0, %v608
    %610 = vdwg.mxu0
    %v611 = vadd.f32 %v527, %v549
    %v612 = vadd.f32 %v528, %v569
    %v613 = vadd.f32 %v529, %v589
    %v614 = vadd.f32 %v530, %v609
    %v615 = vxor.u32 %v611, 2147483648
    %v616 = vmul.f32 %v615, 1.442695
    %v617 = vpow.pop %v616
    %v618 = vadd.f32 %v617, 1.0
    %v619 = vrcp.pop %v618
    %v620 = vmul.f32 %v618, %v619
    %v621 = vsub.f32 1.0, %v620
    %v622 = vmul.f32 %v619, %v621
    %v623 = vadd.f32 %v619, %v622
    %vm624 = vweird.f32 %v618
    %vm625 = vweird.f32 %v619
    %vm626 = vmor %vm624, %vm625
    %v627 = vsel %vm626, %v619, %v623
    %v628 = vand.u32 2147483647, %v618
    %vm629 = vcmp.eq.f32.partialorder %v628, 8.507059e+37
    %v630 = vand.u32 %v618, 2147483648
    %v631 = vor.u32 1.1754944e-38, %v630
    %v632 = vsel %vm629, %v631, %v627
    %v633 = vmul.f32 1.0, %v632
    %v634 = vxor.u32 %v612, 2147483648
    %v635 = vmul.f32 %v634, 1.442695
    %v636 = vpow.pop %v635
    %v637 = vadd.f32 %v636, 1.0
    %v638 = vrcp.pop %v637
    %v639 = vmul.f32 %v637, %v638
    %v640 = vsub.f32 1.0, %v639
    %v641 = vmul.f32 %v638, %v640
    %v642 = vadd.f32 %v638, %v641
    %vm643 = vweird.f32 %v637
    %vm644 = vweird.f32 %v638
    %vm645 = vmor %vm643, %vm644
    %v646 = vsel %vm645, %v638, %v642
    %v647 = vand.u32 2147483647, %v637
    %vm648 = vcmp.eq.f32.partialorder %v647, 8.507059e+37
    %v649 = vand.u32 %v637, 2147483648
    %v650 = vor.u32 1.1754944e-38, %v649
    %v651 = vsel %vm648, %v650, %v646
    %v652 = vmul.f32 1.0, %v651
    %v653 = vtanh.pop %v613
    %v654 = vxor.u32 %v614, 2147483648
    %v655 = vmul.f32 %v654, 1.442695
    %v656 = vpow.pop %v655
    %v657 = vadd.f32 %v656, 1.0
    %v658 = vrcp.pop %v657
    %v659 = vmul.f32 %v657, %v658
    %v660 = vsub.f32 1.0, %v659
    %v661 = vmul.f32 %v658, %v660
    %v662 = vadd.f32 %v658, %v661
    %vm663 = vweird.f32 %v657
    %vm664 = vweird.f32 %v658
    %vm665 = vmor %vm663, %vm664
    %v666 = vsel %vm665, %v658, %v662
    %v667 = vand.u32 2147483647, %v657
    %vm668 = vcmp.eq.f32.partialorder %v667, 8.507059e+37
    %v669 = vand.u32 %v657, 2147483648
    %v670 = vor.u32 1.1754944e-38, %v669
    %v671 = vsel %vm668, %v670, %v666
    %v672 = vmul.f32 1.0, %v671
    %v673 = vmul.f32 %v652, %v523
    %v674 = vmul.f32 %v633, %v653
    %v675 = vadd.f32 %v673, %v674
    %v676 = vtanh.pop %v675
    %v677 = vmul.f32 %v672, %v676
    %vm678 = vcmp.gt.s32.totalorder %v302, 1
    %v679 = vsel %vm678, %v677, %v522
    %v680 = vsel %vm678, %v675, %v523
    %s681 = smul.u32 2, 4
    %s682 = smul.addr %s681, 8
    %s683 = scalar_lea.vmem [#allocation2], %s682
    %v684 = vld [vmem:[%s683] sm:$0xff]
    %v685 = vld [vmem:[%s683 + $0x8] sm:$0xff]
    %v686 = vld [vmem:[%s683 + $0x10] sm:$0xff]
    %v687 = vld [vmem:[%s683 + $0x18] sm:$0xff]
    %688 = vmatpush.msra.mxu0 %v370
    %689 = vmatpush.msra.mxu0 %v366
    %690 = vmatpush.msra.mxu0 %v362
    %691 = vmatpush.msra.mxu0 %v358
    %692 = vmatpush.msra.mxu0 %v354
    %693 = vmatpush.msra.mxu0 %v350
    %694 = vmatpush.msra.mxu0 %v346
    %695 = vmatpush.msra.mxu0 %v342
    %696 = vmatpush.msra.mxu0 %v338
    %697 = vmatpush.msra.mxu0 %v334
    %698 = vmatpush.msra.mxu0 %v330
    %699 = vmatpush.msra.mxu0 %v326
    %700 = vmatpush.msra.mxu0 %v322
    %701 = vmatpush.msra.mxu0 %v318
    %702 = vmatpush.msra.mxu0 %v314
    %703 = vmatpush.msra.mxu0 %v310
    %704 = vmatmul.f32.gmra.mxu0 %v679
    %v705 = vpop.f32.mrf.mxu0
    %v706 = vadd.f32 0.0, %v705
    %707 = vdwg.mxu0
    %708 = vmatpush.msra.mxu0 %v371
    %709 = vmatpush.msra.mxu0 %v367
    %710 = vmatpush.msra.mxu0 %v363
    %711 = vmatpush.msra.mxu0 %v359
    %712 = vmatpush.msra.mxu0 %v355
    %713 = vmatpush.msra.mxu0 %v351
    %714 = vmatpush.msra.mxu0 %v347
    %715 = vmatpush.msra.mxu0 %v343
    %716 = vmatpush.msra.mxu0 %v339
    %717 = vmatpush.msra.mxu0 %v335
    %718 = vmatpush.msra.mxu0 %v331
    %719 = vmatpush.msra.mxu0 %v327
    %720 = vmatpush.msra.mxu0 %v323
    %721 = vmatpush.msra.mxu0 %v319
    %722 = vmatpush.msra.mxu0 %v315
    %723 = vmatpush.msra.mxu0 %v311
    %724 = vmatmul.f32.gmra.mxu0 %v679
    %v725 = vpop.f32.mrf.mxu0
    %v726 = vadd.f32 0.0, %v725
    %727 = vdwg.mxu0
    %728 = vmatpush.msra.mxu0 %v372
    %729 = vmatpush.msra.mxu0 %v368
    %730 = vmatpush.msra.mxu0 %v364
    %731 = vmatpush.msra.mxu0 %v360
    %732 = vmatpush.msra.mxu0 %v356
    %733 = vmatpush.msra.mxu0 %v352
    %734 = vmatpush.msra.mxu0 %v348
    %735 = vmatpush.msra.mxu0 %v344
    %736 = vmatpush.msra.mxu0 %v340
    %737 = vmatpush.msra.mxu0 %v336
    %738 = vmatpush.msra.mxu0 %v332
    %739 = vmatpush.msra.mxu0 %v328
    %740 = vmatpush.msra.mxu0 %v324
    %741 = vmatpush.msra.mxu0 %v320
    %742 = vmatpush.msra.mxu0 %v316
    %743 = vmatpush.msra.mxu0 %v312
    %744 = vmatmul.f32.gmra.mxu0 %v679
    %v745 = vpop.f32.mrf.mxu0
    %v746 = vadd.f32 0.0, %v745
    %747 = vdwg.mxu0
    %748 = vmatpush.msra.mxu0 %v373
    %749 = vmatpush.msra.mxu0 %v369
    %750 = vmatpush.msra.mxu0 %v365
    %751 = vmatpush.msra.mxu0 %v361
    %752 = vmatpush.msra.mxu0 %v357
    %753 = vmatpush.msra.mxu0 %v353
    %754 = vmatpush.msra.mxu0 %v349
    %755 = vmatpush.msra.mxu0 %v345
    %756 = vmatpush.msra.mxu0 %v341
    %757 = vmatpush.msra.mxu0 %v337
    %758 = vmatpush.msra.mxu0 %v333
    %759 = vmatpush.msra.mxu0 %v329
    %760 = vmatpush.msra.mxu0 %v325
    %761 = vmatpush.msra.mxu0 %v321
    %762 = vmatpush.msra.mxu0 %v317
    %763 = vmatpush.msra.mxu0 %v313
    %764 = vmatmul.f32.gmra.mxu0 %v679
    %v765 = vpop.f32.mrf.mxu0
    %v766 = vadd.f32 0.0, %v765
    %767 = vdwg.mxu0
    %v768 = vadd.f32 %v684, %v706
    %v769 = vadd.f32 %v685, %v726
    %v770 = vadd.f32 %v686, %v746
    %v771 = vadd.f32 %v687, %v766
    %v772 = vxor.u32 %v768, 2147483648
    %v773 = vmul.f32 %v772, 1.442695
    %v774 = vpow.pop %v773
    %v775 = vadd.f32 %v774, 1.0
    %v776 = vrcp.pop %v775
    %v777 = vmul.f32 %v775, %v776
    %v778 = vsub.f32 1.0, %v777
    %v779 = vmul.f32 %v776, %v778
    %v780 = vadd.f32 %v776, %v779
    %vm781 = vweird.f32 %v775
    %vm782 = vweird.f32 %v776
    %vm783 = vmor %vm781, %vm782
    %v784 = vsel %vm783, %v776, %v780
    %v785 = vand.u32 2147483647, %v775
    %vm786 = vcmp.eq.f32.partialorder %v785, 8.507059e+37
    %v787 = vand.u32 %v775, 2147483648
    %v788 = vor.u32 1.1754944e-38, %v787
    %v789 = vsel %vm786, %v788, %v784
    %v790 = vmul.f32 1.0, %v789
    %v791 = vxor.u32 %v769, 2147483648
    %v792 = vmul.f32 %v791, 1.442695
    %v793 = vpow.pop %v792
    %v794 = vadd.f32 %v793, 1.0
    %v795 = vrcp.pop %v794
    %v796 = vmul.f32 %v794, %v795
    %v797 = vsub.f32 1.0, %v796
    %v798 = vmul.f32 %v795, %v797
    %v799 = vadd.f32 %v795, %v798
    %vm800 = vweird.f32 %v794
    %vm801 = vweird.f32 %v795
    %vm802 = vmor %vm800, %vm801
    %v803 = vsel %vm802, %v795, %v799
    %v804 = vand.u32 2147483647, %v794
    %vm805 = vcmp.eq.f32.partialorder %v804, 8.507059e+37
    %v806 = vand.u32 %v794, 2147483648
    %v807 = vor.u32 1.1754944e-38, %v806
    %v808 = vsel %vm805, %v807, %v803
    %v809 = vmul.f32 1.0, %v808
    %v810 = vtanh.pop %v770
    %v811 = vxor.u32 %v771, 2147483648
    %v812 = vmul.f32 %v811, 1.442695
    %v813 = vpow.pop %v812
    %v814 = vadd.f32 %v813, 1.0
    %v815 = vrcp.pop %v814
    %v816 = vmul.f32 %v814, %v815
    %v817 = vsub.f32 1.0, %v816
    %v818 = vmul.f32 %v815, %v817
    %v819 = vadd.f32 %v815, %v818
    %vm820 = vweird.f32 %v814
    %vm821 = vweird.f32 %v815
    %vm822 = vmor %vm820, %vm821
    %v823 = vsel %vm822, %v815, %v819
    %v824 = vand.u32 2147483647, %v814
    %vm825 = vcmp.eq.f32.partialorder %v824, 8.507059e+37
    %v826 = vand.u32 %v814, 2147483648
    %v827 = vor.u32 1.1754944e-38, %v826
    %v828 = vsel %vm825, %v827, %v823
    %v829 = vmul.f32 1.0, %v828
    %v830 = vmul.f32 %v809, %v680
    %v831 = vmul.f32 %v790, %v810
    %v832 = vadd.f32 %v830, %v831
    %v833 = vtanh.pop %v832
    %v834 = vmul.f32 %v829, %v833
    %vm835 = vcmp.gt.s32.totalorder %v302, 2
    %v836 = vsel %vm835, %v834, %v679
    %v837 = vsel %vm835, %v832, %v680
    %s838 = smul.u32 3, 4
    %s839 = smul.addr %s838, 8
    %s840 = scalar_lea.vmem [#allocation2], %s839
    %v841 = vld [vmem:[%s840] sm:$0xff]
    %v842 = vld [vmem:[%s840 + $0x8] sm:$0xff]
    %v843 = vld [vmem:[%s840 + $0x10] sm:$0xff]
    %v844 = vld [vmem:[%s840 + $0x18] sm:$0xff]
    %845 = vmatpush.msra.mxu0 %v370
    %846 = vmatpush.msra.mxu0 %v366
    %847 = vmatpush.msra.mxu0 %v362
    %848 = vmatpush.msra.mxu0 %v358
    %849 = vmatpush.msra.mxu0 %v354
    %850 = vmatpush.msra.mxu0 %v350
    %851 = vmatpush.msra.mxu0 %v346
    %852 = vmatpush.msra.mxu0 %v342
    %853 = vmatpush.msra.mxu0 %v338
    %854 = vmatpush.msra.mxu0 %v334
    %855 = vmatpush.msra.mxu0 %v330
    %856 = vmatpush.msra.mxu0 %v326
    %857 = vmatpush.msra.mxu0 %v322
    %858 = vmatpush.msra.mxu0 %v318
    %859 = vmatpush.msra.mxu0 %v314
    %860 = vmatpush.msra.mxu0 %v310
    %861 = vmatmul.f32.gmra.mxu0 %v836
    %v862 = vpop.f32.mrf.mxu0
    %v863 = vadd.f32 0.0, %v862
    %864 = vdwg.mxu0
    %865 = vmatpush.msra.mxu0 %v371
    %866 = vmatpush.msra.mxu0 %v367
    %867 = vmatpush.msra.mxu0 %v363
    %868 = vmatpush.msra.mxu0 %v359
    %869 = vmatpush.msra.mxu0 %v355
    %870 = vmatpush.msra.mxu0 %v351
    %871 = vmatpush.msra.mxu0 %v347
    %872 = vmatpush.msra.mxu0 %v343
    %873 = vmatpush.msra.mxu0 %v339
    %874 = vmatpush.msra.mxu0 %v335
    %875 = vmatpush.msra.mxu0 %v331
    %876 = vmatpush.msra.mxu0 %v327
    %877 = vmatpush.msra.mxu0 %v323
    %878 = vmatpush.msra.mxu0 %v319
    %879 = vmatpush.msra.mxu0 %v315
    %880 = vmatpush.msra.mxu0 %v311
    %881 = vmatmul.f32.gmra.mxu0 %v836
    %v882 = vpop.f32.mrf.mxu0
    %v883 = vadd.f32 0.0, %v882
    %884 = vdwg.mxu0
    %885 = vmatpush.msra.mxu0 %v372
    %886 = vmatpush.msra.mxu0 %v368
    %887 = vmatpush.msra.mxu0 %v364
    %888 = vmatpush.msra.mxu0 %v360
    %889 = vmatpush.msra.mxu0 %v356
    %890 = vmatpush.msra.mxu0 %v352
    %891 = vmatpush.msra.mxu0 %v348
    %892 = vmatpush.msra.mxu0 %v344
    %893 = vmatpush.msra.mxu0 %v340
    %894 = vmatpush.msra.mxu0 %v336
    %895 = vmatpush.msra.mxu0 %v332
    %896 = vmatpush.msra.mxu0 %v328
    %897 = vmatpush.msra.mxu0 %v324
    %898 = vmatpush.msra.mxu0 %v320
    %899 = vmatpush.msra.mxu0 %v316
    %900 = vmatpush.msra.mxu0 %v312
    %901 = vmatmul.f32.gmra.mxu0 %v836
    %v902 = vpop.f32.mrf.mxu0
    %v903 = vadd.f32 0.0, %v902
    %904 = vdwg.mxu0
    %905 = vmatpush.msra.mxu0 %v373
    %906 = vmatpush.msra.mxu0 %v369
    %907 = vmatpush.msra.mxu0 %v365
    %908 = vmatpush.msra.mxu0 %v361
    %909 = vmatpush.msra.mxu0 %v357
    %910 = vmatpush.msra.mxu0 %v353
    %911 = vmatpush.msra.mxu0 %v349
    %912 = vmatpush.msra.mxu0 %v345
    %913 = vmatpush.msra.mxu0 %v341
    %914 = vmatpush.msra.mxu0 %v337
    %915 = vmatpush.msra.mxu0 %v333
    %916 = vmatpush.msra.mxu0 %v329
    %917 = vmatpush.msra.mxu0 %v325
    %918 = vmatpush.msra.mxu0 %v321
    %919 = vmatpush.msra.mxu0 %v317
    %920 = vmatpush.msra.mxu0 %v313
    %921 = vmatmul.f32.gmra.mxu0 %v836
    %v922 = vpop.f32.mrf.mxu0
    %v923 = vadd.f32 0.0, %v922
    %924 = vdwg.mxu0
    %v925 = vadd.f32 %v841, %v863
    %v926 = vadd.f32 %v842, %v883
    %v927 = vadd.f32 %v843, %v903
    %v928 = vadd.f32 %v844, %v923
    %v929 = vxor.u32 %v925, 2147483648
    %v930 = vmul.f32 %v929, 1.442695
    %v931 = vpow.pop %v930
    %v932 = vadd.f32 %v931, 1.0
    %v933 = vrcp.pop %v932
    %v934 = vmul.f32 %v932, %v933
    %v935 = vsub.f32 1.0, %v934
    %v936 = vmul.f32 %v933, %v935
    %v937 = vadd.f32 %v933, %v936
    %vm938 = vweird.f32 %v932
    %vm939 = vweird.f32 %v933
    %vm940 = vmor %vm938, %vm939
    %v941 = vsel %vm940, %v933, %v937
    %v942 = vand.u32 2147483647, %v932
    %vm943 = vcmp.eq.f32.partialorder %v942, 8.507059e+37
    %v944 = vand.u32 %v932, 2147483648
    %v945 = vor.u32 1.1754944e-38, %v944
    %v946 = vsel %vm943, %v945, %v941
    %v947 = vmul.f32 1.0, %v946
    %v948 = vxor.u32 %v926, 2147483648
    %v949 = vmul.f32 %v948, 1.442695
    %v950 = vpow.pop %v949
    %v951 = vadd.f32 %v950, 1.0
    %v952 = vrcp.pop %v951
    %v953 = vmul.f32 %v951, %v952
    %v954 = vsub.f32 1.0, %v953
    %v955 = vmul.f32 %v952, %v954
    %v956 = vadd.f32 %v952, %v955
    %vm957 = vweird.f32 %v951
    %vm958 = vweird.f32 %v952
    %vm959 = vmor %vm957, %vm958
    %v960 = vsel %vm959, %v952, %v956
    %v961 = vand.u32 2147483647, %v951
    %vm962 = vcmp.eq.f32.partialorder %v961, 8.507059e+37
    %v963 = vand.u32 %v951, 2147483648
    %v964 = vor.u32 1.1754944e-38, %v963
    %v965 = vsel %vm962, %v964, %v960
    %v966 = vmul.f32 1.0, %v965
    %v967 = vtanh.pop %v927
    %v968 = vxor.u32 %v928, 2147483648
    %v969 = vmul.f32 %v968, 1.442695
    %v970 = vpow.pop %v969
    %v971 = vadd.f32 %v970, 1.0
    %v972 = vrcp.pop %v971
    %v973 = vmul.f32 %v971, %v972
    %v974 = vsub.f32 1.0, %v973
    %v975 = vmul.f32 %v972, %v974
    %v976 = vadd.f32 %v972, %v975
    %vm977 = vweird.f32 %v971
    %vm978 = vweird.f32 %v972
    %vm979 = vmor %vm977, %vm978
    %v980 = vsel %vm979, %v972, %v976
    %v981 = vand.u32 2147483647, %v971
    %vm982 = vcmp.eq.f32.partialorder %v981, 8.507059e+37
    %v983 = vand.u32 %v971, 2147483648
    %v984 = vor.u32 1.1754944e-38, %v983
    %v985 = vsel %vm982, %v984, %v980
    %v986 = vmul.f32 1.0, %v985
    %v987 = vmul.f32 %v966, %v837
    %v988 = vmul.f32 %v947, %v967
    %v989 = vadd.f32 %v987, %v988
    %v990 = vtanh.pop %v989
    %v991 = vmul.f32 %v986, %v990
    %vm992 = vcmp.gt.s32.totalorder %v302, 3
    %v993 = vsel %vm992, %v991, %v836
    %v994 = vsel %vm992, %v989, %v837
    %s995 = smul.u32 4, 4
    %s996 = smul.addr %s995, 8
    %s997 = scalar_lea.vmem [#allocation2], %s996
    %v998 = vld [vmem:[%s997] sm:$0xff]
    %v999 = vld [vmem:[%s997 + $0x8] sm:$0xff]
    %v1000 = vld [vmem:[%s997 + $0x10] sm:$0xff]
    %v1001 = vld [vmem:[%s997 + $0x18] sm:$0xff]
    %1002 = vmatpush.msra.mxu0 %v370
    %1003 = vmatpush.msra.mxu0 %v366
    %1004 = vmatpush.msra.mxu0 %v362
    %1005 = vmatpush.msra.mxu0 %v358
    %1006 = vmatpush.msra.mxu0 %v354
    %1007 = vmatpush.msra.mxu0 %v350
    %1008 = vmatpush.msra.mxu0 %v346
    %1009 = vmatpush.msra.mxu0 %v342
    %1010 = vmatpush.msra.mxu0 %v338
    %1011 = vmatpush.msra.mxu0 %v334
    %1012 = vmatpush.msra.mxu0 %v330
    %1013 = vmatpush.msra.mxu0 %v326
    %1014 = vmatpush.msra.mxu0 %v322
    %1015 = vmatpush.msra.mxu0 %v318
    %1016 = vmatpush.msra.mxu0 %v314
    %1017 = vmatpush.msra.mxu0 %v310
    %1018 = vmatmul.f32.gmra.mxu0 %v993
    %v1019 = vpop.f32.mrf.mxu0
    %v1020 = vadd.f32 0.0, %v1019
    %1021 = vdwg.mxu0
    %1022 = vmatpush.msra.mxu0 %v371
    %1023 = vmatpush.msra.mxu0 %v367
    %1024 = vmatpush.msra.mxu0 %v363
    %1025 = vmatpush.msra.mxu0 %v359
    %1026 = vmatpush.msra.mxu0 %v355
    %1027 = vmatpush.msra.mxu0 %v351
    %1028 = vmatpush.msra.mxu0 %v347
    %1029 = vmatpush.msra.mxu0 %v343
    %1030 = vmatpush.msra.mxu0 %v339
    %1031 = vmatpush.msra.mxu0 %v335
    %1032 = vmatpush.msra.mxu0 %v331
    %1033 = vmatpush.msra.mxu0 %v327
    %1034 = vmatpush.msra.mxu0 %v323
    %1035 = vmatpush.msra.mxu0 %v319
    %1036 = vmatpush.msra.mxu0 %v315
    %1037 = vmatpush.msra.mxu0 %v311
    %1038 = vmatmul.f32.gmra.mxu0 %v993
    %v1039 = vpop.f32.mrf.mxu0
    %v1040 = vadd.f32 0.0, %v1039
    %1041 = vdwg.mxu0
    %1042 = vmatpush.msra.mxu0 %v372
    %1043 = vmatpush.msra.mxu0 %v368
    %1044 = vmatpush.msra.mxu0 %v364
    %1045 = vmatpush.msra.mxu0 %v360
    %1046 = vmatpush.msra.mxu0 %v356
    %1047 = vmatpush.msra.mxu0 %v352
    %1048 = vmatpush.msra.mxu0 %v348
    %1049 = vmatpush.msra.mxu0 %v344
    %1050 = vmatpush.msra.mxu0 %v340
    %1051 = vmatpush.msra.mxu0 %v336
    %1052 = vmatpush.msra.mxu0 %v332
    %1053 = vmatpush.msra.mxu0 %v328
    %1054 = vmatpush.msra.mxu0 %v324
    %1055 = vmatpush.msra.mxu0 %v320
    %1056 = vmatpush.msra.mxu0 %v316
    %1057 = vmatpush.msra.mxu0 %v312
    %1058 = vmatmul.f32.gmra.mxu0 %v993
    %v1059 = vpop.f32.mrf.mxu0
    %v1060 = vadd.f32 0.0, %v1059
    %1061 = vdwg.mxu0
    %1062 = vmatpush.msra.mxu0 %v373
    %1063 = vmatpush.msra.mxu0 %v369
    %1064 = vmatpush.msra.mxu0 %v365
    %1065 = vmatpush.msra.mxu0 %v361
    %1066 = vmatpush.msra.mxu0 %v357
    %1067 = vmatpush.msra.mxu0 %v353
    %1068 = vmatpush.msra.mxu0 %v349
    %1069 = vmatpush.msra.mxu0 %v345
    %1070 = vmatpush.msra.mxu0 %v341
    %1071 = vmatpush.msra.mxu0 %v337
    %1072 = vmatpush.msra.mxu0 %v333
    %1073 = vmatpush.msra.mxu0 %v329
    %1074 = vmatpush.msra.mxu0 %v325
    %1075 = vmatpush.msra.mxu0 %v321
    %1076 = vmatpush.msra.mxu0 %v317
    %1077 = vmatpush.msra.mxu0 %v313
    %1078 = vmatmul.f32.gmra.mxu0 %v993
    %v1079 = vpop.f32.mrf.mxu0
    %v1080 = vadd.f32 0.0, %v1079
    %1081 = vdwg.mxu0
    %v1082 = vadd.f32 %v998, %v1020
    %v1083 = vadd.f32 %v999, %v1040
    %v1084 = vadd.f32 %v1000, %v1060
    %v1085 = vadd.f32 %v1001, %v1080
    %v1086 = vxor.u32 %v1082, 2147483648
    %v1087 = vmul.f32 %v1086, 1.442695
    %v1088 = vpow.pop %v1087
    %v1089 = vadd.f32 %v1088, 1.0
    %v1090 = vrcp.pop %v1089
    %v1091 = vmul.f32 %v1089, %v1090
    %v1092 = vsub.f32 1.0, %v1091
    %v1093 = vmul.f32 %v1090, %v1092
    %v1094 = vadd.f32 %v1090, %v1093
    %vm1095 = vweird.f32 %v1089
    %vm1096 = vweird.f32 %v1090
    %vm1097 = vmor %vm1095, %vm1096
    %v1098 = vsel %vm1097, %v1090, %v1094
    %v1099 = vand.u32 2147483647, %v1089
    %vm1100 = vcmp.eq.f32.partialorder %v1099, 8.507059e+37
    %v1101 = vand.u32 %v1089, 2147483648
    %v1102 = vor.u32 1.1754944e-38, %v1101
    %v1103 = vsel %vm1100, %v1102, %v1098
    %v1104 = vmul.f32 1.0, %v1103
    %v1105 = vxor.u32 %v1083, 2147483648
    %v1106 = vmul.f32 %v1105, 1.442695
    %v1107 = vpow.pop %v1106
    %v1108 = vadd.f32 %v1107, 1.0
    %v1109 = vrcp.pop %v1108
    %v1110 = vmul.f32 %v1108, %v1109
    %v1111 = vsub.f32 1.0, %v1110
    %v1112 = vmul.f32 %v1109, %v1111
    %v1113 = vadd.f32 %v1109, %v1112
    %vm1114 = vweird.f32 %v1108
    %vm1115 = vweird.f32 %v1109
    %vm1116 = vmor %vm1114, %vm1115
    %v1117 = vsel %vm1116, %v1109, %v1113
    %v1118 = vand.u32 2147483647, %v1108
    %vm1119 = vcmp.eq.f32.partialorder %v1118, 8.507059e+37
    %v1120 = vand.u32 %v1108, 2147483648
    %v1121 = vor.u32 1.1754944e-38, %v1120
    %v1122 = vsel %vm1119, %v1121, %v1117
    %v1123 = vmul.f32 1.0, %v1122
    %v1124 = vtanh.pop %v1084
    %v1125 = vxor.u32 %v1085, 2147483648
    %v1126 = vmul.f32 %v1125, 1.442695
    %v1127 = vpow.pop %v1126
    %v1128 = vadd.f32 %v1127, 1.0
    %v1129 = vrcp.pop %v1128
    %v1130 = vmul.f32 %v1128, %v1129
    %v1131 = vsub.f32 1.0, %v1130
    %v1132 = vmul.f32 %v1129, %v1131
    %v1133 = vadd.f32 %v1129, %v1132
    %vm1134 = vweird.f32 %v1128
    %vm1135 = vweird.f32 %v1129
    %vm1136 = vmor %vm1134, %vm1135
    %v1137 = vsel %vm1136, %v1129, %v1133
    %v1138 = vand.u32 2147483647, %v1128
    %vm1139 = vcmp.eq.f32.partialorder %v1138, 8.507059e+37
    %v1140 = vand.u32 %v1128, 2147483648
    %v1141 = vor.u32 1.1754944e-38, %v1140
    %v1142 = vsel %vm1139, %v1141, %v1137
    %v1143 = vmul.f32 1.0, %v1142
    %v1144 = vmul.f32 %v1123, %v994
    %v1145 = vmul.f32 %v1104, %v1124
    %v1146 = vadd.f32 %v1144, %v1145
    %v1147 = vtanh.pop %v1146
    %v1148 = vmul.f32 %v1143, %v1147
    %vm1149 = vcmp.gt.s32.totalorder %v302, 4
    %v1150 = vsel %vm1149, %v1148, %v993
    %v1151 = vsel %vm1149, %v1146, %v994
    %s1152 = smul.u32 5, 4
    %s1153 = smul.addr %s1152, 8
    %s1154 = scalar_lea.vmem [#allocation2], %s1153
    %v1155 = vld [vmem:[%s1154] sm:$0xff]
    %v1156 = vld [vmem:[%s1154 + $0x8] sm:$0xff]
    %v1157 = vld [vmem:[%s1154 + $0x10] sm:$0xff]
    %v1158 = vld [vmem:[%s1154 + $0x18] sm:$0xff]
    %1159 = vmatpush.msra.mxu0 %v370
    %1160 = vmatpush.msra.mxu0 %v366
    %1161 = vmatpush.msra.mxu0 %v362
    %1162 = vmatpush.msra.mxu0 %v358
    %1163 = vmatpush.msra.mxu0 %v354
    %1164 = vmatpush.msra.mxu0 %v350
    %1165 = vmatpush.msra.mxu0 %v346
    %1166 = vmatpush.msra.mxu0 %v342
    %1167 = vmatpush.msra.mxu0 %v338
    %1168 = vmatpush.msra.mxu0 %v334
    %1169 = vmatpush.msra.mxu0 %v330
    %1170 = vmatpush.msra.mxu0 %v326
    %1171 = vmatpush.msra.mxu0 %v322
    %1172 = vmatpush.msra.mxu0 %v318
    %1173 = vmatpush.msra.mxu0 %v314
    %1174 = vmatpush.msra.mxu0 %v310
    %1175 = vmatmul.f32.gmra.mxu0 %v1150
    %v1176 = vpop.f32.mrf.mxu0
    %v1177 = vadd.f32 0.0, %v1176
    %1178 = vdwg.mxu0
    %1179 = vmatpush.msra.mxu0 %v371
    %1180 = vmatpush.msra.mxu0 %v367
    %1181 = vmatpush.msra.mxu0 %v363
    %1182 = vmatpush.msra.mxu0 %v359
    %1183 = vmatpush.msra.mxu0 %v355
    %1184 = vmatpush.msra.mxu0 %v351
    %1185 = vmatpush.msra.mxu0 %v347
    %1186 = vmatpush.msra.mxu0 %v343
    %1187 = vmatpush.msra.mxu0 %v339
    %1188 = vmatpush.msra.mxu0 %v335
    %1189 = vmatpush.msra.mxu0 %v331
    %1190 = vmatpush.msra.mxu0 %v327
    %1191 = vmatpush.msra.mxu0 %v323
    %1192 = vmatpush.msra.mxu0 %v319
    %1193 = vmatpush.msra.mxu0 %v315
    %1194 = vmatpush.msra.mxu0 %v311
    %1195 = vmatmul.f32.gmra.mxu0 %v1150
    %v1196 = vpop.f32.mrf.mxu0
    %v1197 = vadd.f32 0.0, %v1196
    %1198 = vdwg.mxu0
    %1199 = vmatpush.msra.mxu0 %v372
    %1200 = vmatpush.msra.mxu0 %v368
    %1201 = vmatpush.msra.mxu0 %v364
    %1202 = vmatpush.msra.mxu0 %v360
    %1203 = vmatpush.msra.mxu0 %v356
    %1204 = vmatpush.msra.mxu0 %v352
    %1205 = vmatpush.msra.mxu0 %v348
    %1206 = vmatpush.msra.mxu0 %v344
    %1207 = vmatpush.msra.mxu0 %v340
    %1208 = vmatpush.msra.mxu0 %v336
    %1209 = vmatpush.msra.mxu0 %v332
    %1210 = vmatpush.msra.mxu0 %v328
    %1211 = vmatpush.msra.mxu0 %v324
    %1212 = vmatpush.msra.mxu0 %v320
    %1213 = vmatpush.msra.mxu0 %v316
    %1214 = vmatpush.msra.mxu0 %v312
    %1215 = vmatmul.f32.gmra.mxu0 %v1150
    %v1216 = vpop.f32.mrf.mxu0
    %v1217 = vadd.f32 0.0, %v1216
    %1218 = vdwg.mxu0
    %1219 = vmatpush.msra.mxu0 %v373
    %1220 = vmatpush.msra.mxu0 %v369
    %1221 = vmatpush.msra.mxu0 %v365
    %1222 = vmatpush.msra.mxu0 %v361
    %1223 = vmatpush.msra.mxu0 %v357
    %1224 = vmatpush.msra.mxu0 %v353
    %1225 = vmatpush.msra.mxu0 %v349
    %1226 = vmatpush.msra.mxu0 %v345
    %1227 = vmatpush.msra.mxu0 %v341
    %1228 = vmatpush.msra.mxu0 %v337
    %1229 = vmatpush.msra.mxu0 %v333
    %1230 = vmatpush.msra.mxu0 %v329
    %1231 = vmatpush.msra.mxu0 %v325
    %1232 = vmatpush.msra.mxu0 %v321
    %1233 = vmatpush.msra.mxu0 %v317
    %1234 = vmatpush.msra.mxu0 %v313
    %1235 = vmatmul.f32.gmra.mxu0 %v1150
    %v1236 = vpop.f32.mrf.mxu0
    %v1237 = vadd.f32 0.0, %v1236
    %1238 = vdwg.mxu0
    %v1239 = vadd.f32 %v1155, %v1177
    %v1240 = vadd.f32 %v1156, %v1197
    %v1241 = vadd.f32 %v1157, %v1217
    %v1242 = vadd.f32 %v1158, %v1237
    %v1243 = vxor.u32 %v1239, 2147483648
    %v1244 = vmul.f32 %v1243, 1.442695
    %v1245 = vpow.pop %v1244
    %v1246 = vadd.f32 %v1245, 1.0
    %v1247 = vrcp.pop %v1246
    %v1248 = vmul.f32 %v1246, %v1247
    %v1249 = vsub.f32 1.0, %v1248
    %v1250 = vmul.f32 %v1247, %v1249
    %v1251 = vadd.f32 %v1247, %v1250
    %vm1252 = vweird.f32 %v1246
    %vm1253 = vweird.f32 %v1247
    %vm1254 = vmor %vm1252, %vm1253
    %v1255 = vsel %vm1254, %v1247, %v1251
    %v1256 = vand.u32 2147483647, %v1246
    %vm1257 = vcmp.eq.f32.partialorder %v1256, 8.507059e+37
    %v1258 = vand.u32 %v1246, 2147483648
    %v1259 = vor.u32 1.1754944e-38, %v1258
    %v1260 = vsel %vm1257, %v1259, %v1255
    %v1261 = vmul.f32 1.0, %v1260
    %v1262 = vxor.u32 %v1240, 2147483648
    %v1263 = vmul.f32 %v1262, 1.442695
    %v1264 = vpow.pop %v1263
    %v1265 = vadd.f32 %v1264, 1.0
    %v1266 = vrcp.pop %v1265
    %v1267 = vmul.f32 %v1265, %v1266
    %v1268 = vsub.f32 1.0, %v1267
    %v1269 = vmul.f32 %v1266, %v1268
    %v1270 = vadd.f32 %v1266, %v1269
    %vm1271 = vweird.f32 %v1265
    %vm1272 = vweird.f32 %v1266
    %vm1273 = vmor %vm1271, %vm1272
    %v1274 = vsel %vm1273, %v1266, %v1270
    %v1275 = vand.u32 2147483647, %v1265
    %vm1276 = vcmp.eq.f32.partialorder %v1275, 8.507059e+37
    %v1277 = vand.u32 %v1265, 2147483648
    %v1278 = vor.u32 1.1754944e-38, %v1277
    %v1279 = vsel %vm1276, %v1278, %v1274
    %v1280 = vmul.f32 1.0, %v1279
    %v1281 = vtanh.pop %v1241
    %v1282 = vxor.u32 %v1242, 2147483648
    %v1283 = vmul.f32 %v1282, 1.442695
    %v1284 = vpow.pop %v1283
    %v1285 = vadd.f32 %v1284, 1.0
    %v1286 = vrcp.pop %v1285
    %v1287 = vmul.f32 %v1285, %v1286
    %v1288 = vsub.f32 1.0, %v1287
    %v1289 = vmul.f32 %v1286, %v1288
    %v1290 = vadd.f32 %v1286, %v1289
    %vm1291 = vweird.f32 %v1285
    %vm1292 = vweird.f32 %v1286
    %vm1293 = vmor %vm1291, %vm1292
    %v1294 = vsel %vm1293, %v1286, %v1290
    %v1295 = vand.u32 2147483647, %v1285
    %vm1296 = vcmp.eq.f32.partialorder %v1295, 8.507059e+37
    %v1297 = vand.u32 %v1285, 2147483648
    %v1298 = vor.u32 1.1754944e-38, %v1297
    %v1299 = vsel %vm1296, %v1298, %v1294
    %v1300 = vmul.f32 1.0, %v1299
    %v1301 = vmul.f32 %v1280, %v1151
    %v1302 = vmul.f32 %v1261, %v1281
    %v1303 = vadd.f32 %v1301, %v1302
    %v1304 = vtanh.pop %v1303
    %v1305 = vmul.f32 %v1300, %v1304
    %vm1306 = vcmp.gt.s32.totalorder %v302, 5
    %v1307 = vsel %vm1306, %v1305, %v1150
    %v1308 = vsel %vm1306, %v1303, %v1151
    %s1309 = smul.u32 6, 4
    %s1310 = smul.addr %s1309, 8
    %s1311 = scalar_lea.vmem [#allocation2], %s1310
    %v1312 = vld [vmem:[%s1311] sm:$0xff]
    %v1313 = vld [vmem:[%s1311 + $0x8] sm:$0xff]
    %v1314 = vld [vmem:[%s1311 + $0x10] sm:$0xff]
    %v1315 = vld [vmem:[%s1311 + $0x18] sm:$0xff]
    %1316 = vmatpush.msra.mxu0 %v370
    %1317 = vmatpush.msra.mxu0 %v366
    %1318 = vmatpush.msra.mxu0 %v362
    %1319 = vmatpush.msra.mxu0 %v358
    %1320 = vmatpush.msra.mxu0 %v354
    %1321 = vmatpush.msra.mxu0 %v350
    %1322 = vmatpush.msra.mxu0 %v346
    %1323 = vmatpush.msra.mxu0 %v342
    %1324 = vmatpush.msra.mxu0 %v338
    %1325 = vmatpush.msra.mxu0 %v334
    %1326 = vmatpush.msra.mxu0 %v330
    %1327 = vmatpush.msra.mxu0 %v326
    %1328 = vmatpush.msra.mxu0 %v322
    %1329 = vmatpush.msra.mxu0 %v318
    %1330 = vmatpush.msra.mxu0 %v314
    %1331 = vmatpush.msra.mxu0 %v310
    %1332 = vmatmul.f32.gmra.mxu0 %v1307
    %v1333 = vpop.f32.mrf.mxu0
    %v1334 = vadd.f32 0.0, %v1333
    %1335 = vdwg.mxu0
    %1336 = vmatpush.msra.mxu0 %v371
    %1337 = vmatpush.msra.mxu0 %v367
    %1338 = vmatpush.msra.mxu0 %v363
    %1339 = vmatpush.msra.mxu0 %v359
    %1340 = vmatpush.msra.mxu0 %v355
    %1341 = vmatpush.msra.mxu0 %v351
    %1342 = vmatpush.msra.mxu0 %v347
    %1343 = vmatpush.msra.mxu0 %v343
    %1344 = vmatpush.msra.mxu0 %v339
    %1345 = vmatpush.msra.mxu0 %v335
    %1346 = vmatpush.msra.mxu0 %v331
    %1347 = vmatpush.msra.mxu0 %v327
    %1348 = vmatpush.msra.mxu0 %v323
    %1349 = vmatpush.msra.mxu0 %v319
    %1350 = vmatpush.msra.mxu0 %v315
    %1351 = vmatpush.msra.mxu0 %v311
    %1352 = vmatmul.f32.gmra.mxu0 %v1307
    %v1353 = vpop.f32.mrf.mxu0
    %v1354 = vadd.f32 0.0, %v1353
    %1355 = vdwg.mxu0
    %1356 = vmatpush.msra.mxu0 %v372
    %1357 = vmatpush.msra.mxu0 %v368
    %1358 = vmatpush.msra.mxu0 %v364
    %1359 = vmatpush.msra.mxu0 %v360
    %1360 = vmatpush.msra.mxu0 %v356
    %1361 = vmatpush.msra.mxu0 %v352
    %1362 = vmatpush.msra.mxu0 %v348
    %1363 = vmatpush.msra.mxu0 %v344
    %1364 = vmatpush.msra.mxu0 %v340
    %1365 = vmatpush.msra.mxu0 %v336
    %1366 = vmatpush.msra.mxu0 %v332
    %1367 = vmatpush.msra.mxu0 %v328
    %1368 = vmatpush.msra.mxu0 %v324
    %1369 = vmatpush.msra.mxu0 %v320
    %1370 = vmatpush.msra.mxu0 %v316
    %1371 = vmatpush.msra.mxu0 %v312
    %1372 = vmatmul.f32.gmra.mxu0 %v1307
    %v1373 = vpop.f32.mrf.mxu0
    %v1374 = vadd.f32 0.0, %v1373
    %1375 = vdwg.mxu0
    %1376 = vmatpush.msra.mxu0 %v373
    %1377 = vmatpush.msra.mxu0 %v369
    %1378 = vmatpush.msra.mxu0 %v365
    %1379 = vmatpush.msra.mxu0 %v361
    %1380 = vmatpush.msra.mxu0 %v357
    %1381 = vmatpush.msra.mxu0 %v353
    %1382 = vmatpush.msra.mxu0 %v349
    %1383 = vmatpush.msra.mxu0 %v345
    %1384 = vmatpush.msra.mxu0 %v341
    %1385 = vmatpush.msra.mxu0 %v337
    %1386 = vmatpush.msra.mxu0 %v333
    %1387 = vmatpush.msra.mxu0 %v329
    %1388 = vmatpush.msra.mxu0 %v325
    %1389 = vmatpush.msra.mxu0 %v321
    %1390 = vmatpush.msra.mxu0 %v317
    %1391 = vmatpush.msra.mxu0 %v313
    %1392 = vmatmul.f32.gmra.mxu0 %v1307
    %v1393 = vpop.f32.mrf.mxu0
    %v1394 = vadd.f32 0.0, %v1393
    %1395 = vdwg.mxu0
    %v1396 = vadd.f32 %v1312, %v1334
    %v1397 = vadd.f32 %v1313, %v1354
    %v1398 = vadd.f32 %v1314, %v1374
    %v1399 = vadd.f32 %v1315, %v1394
    %v1400 = vxor.u32 %v1396, 2147483648
    %v1401 = vmul.f32 %v1400, 1.442695
    %v1402 = vpow.pop %v1401
    %v1403 = vadd.f32 %v1402, 1.0
    %v1404 = vrcp.pop %v1403
    %v1405 = vmul.f32 %v1403, %v1404
    %v1406 = vsub.f32 1.0, %v1405
    %v1407 = vmul.f32 %v1404, %v1406
    %v1408 = vadd.f32 %v1404, %v1407
    %vm1409 = vweird.f32 %v1403
    %vm1410 = vweird.f32 %v1404
    %vm1411 = vmor %vm1409, %vm1410
    %v1412 = vsel %vm1411, %v1404, %v1408
    %v1413 = vand.u32 2147483647, %v1403
    %vm1414 = vcmp.eq.f32.partialorder %v1413, 8.507059e+37
    %v1415 = vand.u32 %v1403, 2147483648
    %v1416 = vor.u32 1.1754944e-38, %v1415
    %v1417 = vsel %vm1414, %v1416, %v1412
    %v1418 = vmul.f32 1.0, %v1417
    %v1419 = vxor.u32 %v1397, 2147483648
    %v1420 = vmul.f32 %v1419, 1.442695
    %v1421 = vpow.pop %v1420
    %v1422 = vadd.f32 %v1421, 1.0
    %v1423 = vrcp.pop %v1422
    %v1424 = vmul.f32 %v1422, %v1423
    %v1425 = vsub.f32 1.0, %v1424
    %v1426 = vmul.f32 %v1423, %v1425
    %v1427 = vadd.f32 %v1423, %v1426
    %vm1428 = vweird.f32 %v1422
    %vm1429 = vweird.f32 %v1423
    %vm1430 = vmor %vm1428, %vm1429
    %v1431 = vsel %vm1430, %v1423, %v1427
    %v1432 = vand.u32 2147483647, %v1422
    %vm1433 = vcmp.eq.f32.partialorder %v1432, 8.507059e+37
    %v1434 = vand.u32 %v1422, 2147483648
    %v1435 = vor.u32 1.1754944e-38, %v1434
    %v1436 = vsel %vm1433, %v1435, %v1431
    %v1437 = vmul.f32 1.0, %v1436
    %v1438 = vtanh.pop %v1398
    %v1439 = vxor.u32 %v1399, 2147483648
    %v1440 = vmul.f32 %v1439, 1.442695
    %v1441 = vpow.pop %v1440
    %v1442 = vadd.f32 %v1441, 1.0
    %v1443 = vrcp.pop %v1442
    %v1444 = vmul.f32 %v1442, %v1443
    %v1445 = vsub.f32 1.0, %v1444
    %v1446 = vmul.f32 %v1443, %v1445
    %v1447 = vadd.f32 %v1443, %v1446
    %vm1448 = vweird.f32 %v1442
    %vm1449 = vweird.f32 %v1443
    %vm1450 = vmor %vm1448, %vm1449
    %v1451 = vsel %vm1450, %v1443, %v1447
    %v1452 = vand.u32 2147483647, %v1442
    %vm1453 = vcmp.eq.f32.partialorder %v1452, 8.507059e+37
    %v1454 = vand.u32 %v1442, 2147483648
    %v1455 = vor.u32 1.1754944e-38, %v1454
    %v1456 = vsel %vm1453, %v1455, %v1451
    %v1457 = vmul.f32 1.0, %v1456
    %v1458 = vmul.f32 %v1437, %v1308
    %v1459 = vmul.f32 %v1418, %v1438
    %v1460 = vadd.f32 %v1458, %v1459
    %v1461 = vtanh.pop %v1460
    %v1462 = vmul.f32 %v1457, %v1461
    %vm1463 = vcmp.gt.s32.totalorder %v302, 6
    %v1464 = vsel %vm1463, %v1462, %v1307
    %v1465 = vsel %vm1463, %v1460, %v1308
    %s1466 = smul.u32 7, 4
    %s1467 = smul.addr %s1466, 8
    %s1468 = scalar_lea.vmem [#allocation2], %s1467
    %v1469 = vld [vmem:[%s1468] sm:$0xff]
    %v1470 = vld [vmem:[%s1468 + $0x8] sm:$0xff]
    %v1471 = vld [vmem:[%s1468 + $0x10] sm:$0xff]
    %v1472 = vld [vmem:[%s1468 + $0x18] sm:$0xff]
    %1473 = vmatpush.msra.mxu0 %v370
    %1474 = vmatpush.msra.mxu0 %v366
    %1475 = vmatpush.msra.mxu0 %v362
    %1476 = vmatpush.msra.mxu0 %v358
    %1477 = vmatpush.msra.mxu0 %v354
    %1478 = vmatpush.msra.mxu0 %v350
    %1479 = vmatpush.msra.mxu0 %v346
    %1480 = vmatpush.msra.mxu0 %v342
    %1481 = vmatpush.msra.mxu0 %v338
    %1482 = vmatpush.msra.mxu0 %v334
    %1483 = vmatpush.msra.mxu0 %v330
    %1484 = vmatpush.msra.mxu0 %v326
    %1485 = vmatpush.msra.mxu0 %v322
    %1486 = vmatpush.msra.mxu0 %v318
    %1487 = vmatpush.msra.mxu0 %v314
    %1488 = vmatpush.msra.mxu0 %v310
    %1489 = vmatmul.f32.gmra.mxu0 %v1464
    %v1490 = vpop.f32.mrf.mxu0
    %v1491 = vadd.f32 0.0, %v1490
    %1492 = vdwg.mxu0
    %1493 = vmatpush.msra.mxu0 %v371
    %1494 = vmatpush.msra.mxu0 %v367
    %1495 = vmatpush.msra.mxu0 %v363
    %1496 = vmatpush.msra.mxu0 %v359
    %1497 = vmatpush.msra.mxu0 %v355
    %1498 = vmatpush.msra.mxu0 %v351
    %1499 = vmatpush.msra.mxu0 %v347
    %1500 = vmatpush.msra.mxu0 %v343
    %1501 = vmatpush.msra.mxu0 %v339
    %1502 = vmatpush.msra.mxu0 %v335
    %1503 = vmatpush.msra.mxu0 %v331
    %1504 = vmatpush.msra.mxu0 %v327
    %1505 = vmatpush.msra.mxu0 %v323
    %1506 = vmatpush.msra.mxu0 %v319
    %1507 = vmatpush.msra.mxu0 %v315
    %1508 = vmatpush.msra.mxu0 %v311
    %1509 = vmatmul.f32.gmra.mxu0 %v1464
    %v1510 = vpop.f32.mrf.mxu0
    %v1511 = vadd.f32 0.0, %v1510
    %1512 = vdwg.mxu0
    %1513 = vmatpush.msra.mxu0 %v372
    %1514 = vmatpush.msra.mxu0 %v368
    %1515 = vmatpush.msra.mxu0 %v364
    %1516 = vmatpush.msra.mxu0 %v360
    %1517 = vmatpush.msra.mxu0 %v356
    %1518 = vmatpush.msra.mxu0 %v352
    %1519 = vmatpush.msra.mxu0 %v348
    %1520 = vmatpush.msra.mxu0 %v344
    %1521 = vmatpush.msra.mxu0 %v340
    %1522 = vmatpush.msra.mxu0 %v336
    %1523 = vmatpush.msra.mxu0 %v332
    %1524 = vmatpush.msra.mxu0 %v328
    %1525 = vmatpush.msra.mxu0 %v324
    %1526 = vmatpush.msra.mxu0 %v320
    %1527 = vmatpush.msra.mxu0 %v316
    %1528 = vmatpush.msra.mxu0 %v312
    %1529 = vmatmul.f32.gmra.mxu0 %v1464
    %v1530 = vpop.f32.mrf.mxu0
    %v1531 = vadd.f32 0.0, %v1530
    %1532 = vdwg.mxu0
    %1533 = vmatpush.msra.mxu0 %v373
    %1534 = vmatpush.msra.mxu0 %v369
    %1535 = vmatpush.msra.mxu0 %v365
    %1536 = vmatpush.msra.mxu0 %v361
    %1537 = vmatpush.msra.mxu0 %v357
    %1538 = vmatpush.msra.mxu0 %v353
    %1539 = vmatpush.msra.mxu0 %v349
    %1540 = vmatpush.msra.mxu0 %v345
    %1541 = vmatpush.msra.mxu0 %v341
    %1542 = vmatpush.msra.mxu0 %v337
    %1543 = vmatpush.msra.mxu0 %v333
    %1544 = vmatpush.msra.mxu0 %v329
    %1545 = vmatpush.msra.mxu0 %v325
    %1546 = vmatpush.msra.mxu0 %v321
    %1547 = vmatpush.msra.mxu0 %v317
    %1548 = vmatpush.msra.mxu0 %v313
    %1549 = vmatmul.f32.gmra.mxu0 %v1464
    %v1550 = vpop.f32.mrf.mxu0
    %v1551 = vadd.f32 0.0, %v1550
    %1552 = vdwg.mxu0
    %v1553 = vadd.f32 %v1469, %v1491
    %v1554 = vadd.f32 %v1470, %v1511
    %v1555 = vadd.f32 %v1471, %v1531
    %v1556 = vadd.f32 %v1472, %v1551
    %v1557 = vxor.u32 %v1553, 2147483648
    %v1558 = vmul.f32 %v1557, 1.442695
    %v1559 = vpow.pop %v1558
    %v1560 = vadd.f32 %v1559, 1.0
    %v1561 = vrcp.pop %v1560
    %v1562 = vmul.f32 %v1560, %v1561
    %v1563 = vsub.f32 1.0, %v1562
    %v1564 = vmul.f32 %v1561, %v1563
    %v1565 = vadd.f32 %v1561, %v1564
    %vm1566 = vweird.f32 %v1560
    %vm1567 = vweird.f32 %v1561
    %vm1568 = vmor %vm1566, %vm1567
    %v1569 = vsel %vm1568, %v1561, %v1565
    %v1570 = vand.u32 2147483647, %v1560
    %vm1571 = vcmp.eq.f32.partialorder %v1570, 8.507059e+37
    %v1572 = vand.u32 %v1560, 2147483648
    %v1573 = vor.u32 1.1754944e-38, %v1572
    %v1574 = vsel %vm1571, %v1573, %v1569
    %v1575 = vmul.f32 1.0, %v1574
    %v1576 = vxor.u32 %v1554, 2147483648
    %v1577 = vmul.f32 %v1576, 1.442695
    %v1578 = vpow.pop %v1577
    %v1579 = vadd.f32 %v1578, 1.0
    %v1580 = vrcp.pop %v1579
    %v1581 = vmul.f32 %v1579, %v1580
    %v1582 = vsub.f32 1.0, %v1581
    %v1583 = vmul.f32 %v1580, %v1582
    %v1584 = vadd.f32 %v1580, %v1583
    %vm1585 = vweird.f32 %v1579
    %vm1586 = vweird.f32 %v1580
    %vm1587 = vmor %vm1585, %vm1586
    %v1588 = vsel %vm1587, %v1580, %v1584
    %v1589 = vand.u32 2147483647, %v1579
    %vm1590 = vcmp.eq.f32.partialorder %v1589, 8.507059e+37
    %v1591 = vand.u32 %v1579, 2147483648
    %v1592 = vor.u32 1.1754944e-38, %v1591
    %v1593 = vsel %vm1590, %v1592, %v1588
    %v1594 = vmul.f32 1.0, %v1593
    %v1595 = vtanh.pop %v1555
    %v1596 = vxor.u32 %v1556, 2147483648
    %v1597 = vmul.f32 %v1596, 1.442695
    %v1598 = vpow.pop %v1597
    %v1599 = vadd.f32 %v1598, 1.0
    %v1600 = vrcp.pop %v1599
    %v1601 = vmul.f32 %v1599, %v1600
    %v1602 = vsub.f32 1.0, %v1601
    %v1603 = vmul.f32 %v1600, %v1602
    %v1604 = vadd.f32 %v1600, %v1603
    %vm1605 = vweird.f32 %v1599
    %vm1606 = vweird.f32 %v1600
    %vm1607 = vmor %vm1605, %vm1606
    %v1608 = vsel %vm1607, %v1600, %v1604
    %v1609 = vand.u32 2147483647, %v1599
    %vm1610 = vcmp.eq.f32.partialorder %v1609, 8.507059e+37
    %v1611 = vand.u32 %v1599, 2147483648
    %v1612 = vor.u32 1.1754944e-38, %v1611
    %v1613 = vsel %vm1610, %v1612, %v1608
    %v1614 = vmul.f32 1.0, %v1613
    %v1615 = vmul.f32 %v1594, %v1465
    %v1616 = vmul.f32 %v1575, %v1595
    %v1617 = vadd.f32 %v1615, %v1616
    %v1618 = vtanh.pop %v1617
    %v1619 = vmul.f32 %v1614, %v1618
    %vm1620 = vcmp.gt.s32.totalorder %v302, 7
    %v1621 = vsel %vm1620, %v1619, %v1464
    %v1622 = vand.u32 %v302, 65535
    %v1623 = vshra.s32 %v302, 16
    %v1624 = vcvt.s32.f32 %v1622
    %v1625 = vcvt.s32.f32 %v1623
    %1626 = vmax.xlane.f32.xlu0 %v1625
    %v1627 = vpop.xlane.xlu0 %1626
    %vm1628 = vcmp.eq.f32.partialorder %v1625, %v1627
    %v1629 = vsel %vm1628, %v1624, -inf
    %1630 = vmax.xlane.f32.xlu0 %v1629
    %v1631 = vpop.xlane.xlu0 %1630
    %v1632 = vcvt.f32.s32 %v1631
    %v1633 = vcvt.f32.s32 %v1627
    %v1634 = vshll.u32 %v1633, 16
    %v1635 = vadd.s32 %v1634, %v1632
    %v1636 = vrot.slane %v1635, 4
    %vm1637 = vcmp.gt.s32.totalorder %v1635, %v1636
    %v1638 = vsel %vm1637, %v1635, %v1636
    %v1639 = vrot.slane %v1638, 2
    %vm1640 = vcmp.gt.s32.totalorder %v1638, %v1639
    %v1641 = vsel %vm1640, %v1638, %v1639
    %v1642 = vrot.slane %v1641, 1
    %vm1643 = vcmp.gt.s32.totalorder %v1641, %v1642
    %v1644 = vsel %vm1643, %v1641, %v1642
    %s1645 = vtos %v1644
    %v1646 = vstv %s1645
    %vm1647 = vcmp.eq.s32.totalorder %v302, %v1646
    %v1648 = vsel %vm1647, %v1621, 0.0
    %v1649 = vld [vmem:[#allocation6] sm:$0xff]
    %v1650 = vld [vmem:[#allocation6 + $0x8] sm:$0xff]
    %v1651 = vld [vmem:[#allocation6 + $0x10] sm:$0xff]
    %v1652 = vld [vmem:[#allocation6 + $0x18] sm:$0xff]
    %v1653 = vld [vmem:[#allocation6 + $0x20] sm:$0xff]
    %v1654 = vld [vmem:[#allocation6 + $0x28] sm:$0xff]
    %v1655 = vld [vmem:[#allocation6 + $0x30] sm:$0xff]
    %v1656 = vld [vmem:[#allocation6 + $0x38] sm:$0xff]
    %v1657 = vld [vmem:[#allocation6 + $0x40] sm:$0xff]
    %v1658 = vld [vmem:[#allocation6 + $0x48] sm:$0xff]
    %v1659 = vld [vmem:[#allocation6 + $0x50] sm:$0xff]
    %v1660 = vld [vmem:[#allocation6 + $0x58] sm:$0xff]
    %v1661 = vld [vmem:[#allocation6 + $0x60] sm:$0xff]
    %v1662 = vld [vmem:[#allocation6 + $0x68] sm:$0xff]
    %v1663 = vld [vmem:[#allocation6 + $0x70] sm:$0xff]
    %v1664 = vld [vmem:[#allocation6 + $0x78] sm:$0xff]
    %v1665 = vld [vmem:[%s6] sm:$0x1]
    %v1667 = vperm.slane %v1665, 0
    %1669 = vmatpush.msra.mxu0 %v1664
    %1670 = vmatpush.msra.mxu0 %v1663
    %1671 = vmatpush.msra.mxu0 %v1662
    %1672 = vmatpush.msra.mxu0 %v1661
    %1673 = vmatpush.msra.mxu0 %v1660
    %1674 = vmatpush.msra.mxu0 %v1659
    %1675 = vmatpush.msra.mxu0 %v1658
    %1676 = vmatpush.msra.mxu0 %v1657
    %1677 = vmatpush.msra.mxu0 %v1656
    %1678 = vmatpush.msra.mxu0 %v1655
    %1679 = vmatpush.msra.mxu0 %v1654
    %1680 = vmatpush.msra.mxu0 %v1653
    %1681 = vmatpush.msra.mxu0 %v1652
    %1682 = vmatpush.msra.mxu0 %v1651
    %1683 = vmatpush.msra.mxu0 %v1650
    %1684 = vmatpush.msra.mxu0 %v1649
    %1685 = vmatmul.f32.gmra.mxu0 %v1648
    %v1686 = vpop.f32.mrf.mxu0
    %v1687 = vadd.f32 %v1667, %v1686
    %1688 = vdwg.mxu0
    %1689 = vst [vmem:[#allocation8] sm:$0xff] %v1687
    // Predicated region
    $region38: #{tpu_custom_call.1} parent=1 // pred_check
      _
    $region39: #{tpu_custom_call.1} parent=1 // pred_check_branch
      %1691 = sbr.rel (0) target = $region41
    $region40: #{tpu_custom_call.1} parent=1 // pred_region
      %1693 = vsyncadd [#allocation5], 0
      %s1695 = sshll.u32 [#allocation8], 4
      %s1696 = int_to_ptr.vmem [resolvable:$true] %s1695
      %s1697 = sshll.u32 %s7, 4
      %s1698 = int_to_ptr.hbm [resolvable:$true] %s1697
      %1700 = dma.vmem_to_hbm [thread:$0]  %s1696, 128, %s1698, [#allocation5]
    $region41: #{tpu_custom_call.1} parent=1 // pred_fallthru
      _
    // Predicated region
    $region42: #{tpu_custom_call.1} parent=1 // pred_check
      _
    $region43: #{tpu_custom_call.1} parent=1 // pred_check_branch
      %1702 = sbr.rel (0) target = $region45
    $region44: #{tpu_custom_call.1} parent=1 // pred_region
      %1704 = dma.done [#allocation5], 128
    $region45: #{tpu_custom_call.1} parent=1 // pred_fallthru
      _
    %1705 = vsyncpa [#allocation4], 1
    %1706 = vsyncpa [#allocation7], 1
    %1707 = vsyncpa [#allocation5], 1

</llo_original>
